<compile_context>
chip_gen: v7x
topology: tpu7x:2x2x1
jax: 0.10.0
libtpu: 0.0.40
codegen_flags: <defaults>
</compile_context>

<pallas_src>
import math

import jax
import jax.numpy as jnp
from jax import lax
from jax.experimental import pallas as pl
from jax.experimental.pallas import tpu as pltpu

# ---------------- model dimensions (small, synthetic) ----------------
B = 2          # batch (and number of in-batch candidate entities)
S = 8          # sequence length
H = 32         # real hidden size
I_FF = 64      # real FFN intermediate size
VOCAB = 128    # vocab size (shared by both towers here)
LN_EPS = 1e-12
BS = B * S
N_TOWERS = 2   # tower 0 = mention encoder, tower 1 = entity encoder

HP = 128       # lane-padded hidden / intermediate width (all segments 128 wide)

# ---------------- packed-slab column offsets (static, 128-aligned) ----------------
# weight slab: (HP, W_COLS), columns = [Wq*scale | Wk | Wv | Wo | W1 | W2 | Wp]
W_QKV0, W_QKV1 = 0 * HP, 3 * HP
W_O0,  W_O1  = 3 * HP, 4 * HP
W_10,  W_11  = 4 * HP, 5 * HP
W_20,  W_21  = 5 * HP, 6 * HP
W_P0,  W_P1  = 6 * HP, 7 * HP
W_COLS = 7 * HP                       # 896

# bias/LN slab: (1, B_COLS), columns =
#   [bq*scale | bk | bv | bo | ln1_g | ln1_b | b1 | b2 | ln2_g | ln2_b | bp]
B_QKV0, B_QKV1 = 0 * HP, 3 * HP
B_O0,  B_O1  = 3 * HP, 4 * HP
L1G0,  L1G1  = 4 * HP, 5 * HP
L1B0,  L1B1  = 5 * HP, 6 * HP
B_10,  B_11  = 6 * HP, 7 * HP
B_20,  B_21  = 7 * HP, 8 * HP
L2G0,  L2G1  = 8 * HP, 9 * HP
L2B0,  L2B1  = 9 * HP, 10 * HP
B_P0,  B_P1  = 10 * HP, 11 * HP
B_COLS = 11 * HP                      # 1408


# ---------------- in-kernel helpers ----------------
def _layernorm_masked(x, g, b, fmask):
    """LayerNorm over the real H lanes of a (rows, HP) slab.

    Padded lanes (>= H) of x are exactly zero; g and b are zero in padded
    lanes, so the output stays exactly zero there too.
    """
    mu = jnp.sum(x, axis=-1, keepdims=True) * (1.0 / H)
    xc = (x - mu) * fmask
    var = jnp.sum(xc * xc, axis=-1, keepdims=True) * (1.0 / H)
    return xc * lax.rsqrt(var + LN_EPS) * g + b


def _gelu(x):
    # TODO(synk): tanh approximation, not the exact erf GELU of HF BERT.
    return 0.5 * x * (1.0 + jnp.tanh(0.7978845608028654 * (x + 0.044715 * x * x * x)))


# ---------------- Pallas kernel: one tower per grid step ----------------
def biencoder_kernel(
    x_ref,        # (B, S, HP)   bf16 embedded tokens, lane-padded, this tower
    mask_ref,     # (B, S)       int32 attention mask (1 = valid key)
    w_ref,        # (HP, W_COLS) bf16 packed weight slab
    b_ref,        # (1, B_COLS)  f32  packed bias/LN slab
    hidden_ref,   # out: (BS, HP) f32 last_hidden_state (lane-dense)
    pooled_ref,   # out: (B, HP)  f32 pooler_output (lane-dense)
):
    fmask = (lax.broadcasted_iota(jnp.int32, (1, HP), 1) < H).astype(jnp.float32)

    x = x_ref[...].reshape(BS, HP)                       # bf16, padded lanes = 0

    # --- fused QKV (attention 1/sqrt(H) scale pre-folded into the Q segment) ---
    qkv = jnp.dot(x, w_ref[:, W_QKV0:W_QKV1],
                  preferred_element_type=jnp.float32) + b_ref[:, B_QKV0:B_QKV1]
    qb = qkv[:, 0 * HP:1 * HP].reshape(B, S, HP).astype(jnp.bfloat16)
    kb = qkv[:, 1 * HP:2 * HP].reshape(B, S, HP).astype(jnp.bfloat16)
    vb = qkv[:, 2 * HP:3 * HP].reshape(B, S, HP).astype(jnp.bfloat16)

    # --- per-batch-row attention with in-kernel key-padding bias ---
    s = jnp.einsum('bqd,bkd->bqk', qb, kb,
                   preferred_element_type=jnp.float32)               # (B, S, S)
    key_bias = jnp.where(mask_ref[...] > 0, 0.0, -1e30).astype(jnp.float32)
    s = s + key_bias[:, None, :]
    p = jnp.exp(s - jnp.max(s, axis=-1, keepdims=True))
    p = p * pl.reciprocal(jnp.sum(p, axis=-1, keepdims=True), approx=True)
    ctx = jnp.einsum('bqk,bkd->bqd', p.astype(jnp.bfloat16), vb,
                     preferred_element_type=jnp.float32).reshape(BS, HP)

    attn = jnp.dot(ctx.astype(jnp.bfloat16), w_ref[:, W_O0:W_O1],
                   preferred_element_type=jnp.float32) + b_ref[:, B_O0:B_O1]
    h1 = _layernorm_masked(x.astype(jnp.float32) + attn,
                           b_ref[:, L1G0:L1G1], b_ref[:, L1B0:L1B1], fmask)

    # --- feed forward ---
    f = jnp.dot(h1.astype(jnp.bfloat16), w_ref[:, W_10:W_11],
                preferred_element_type=jnp.float32) + b_ref[:, B_10:B_11]
    f = _gelu(f)
    f = jnp.dot(f.astype(jnp.bfloat16), w_ref[:, W_20:W_21],
                preferred_element_type=jnp.float32) + b_ref[:, B_20:B_21]
    h2 = _layernorm_masked(h1 + f,
                           b_ref[:, L2G0:L2G1], b_ref[:, L2B0:L2B1], fmask)

    hidden_ref[...] = h2                                              # (BS, HP)

    # --- pooler: tanh(W_p · h[CLS]) per batch row ---
    cls = h2.reshape(B, S, HP)[:, 0, :]                               # (B, HP)
    pooled = jnp.tanh(jnp.dot(cls.astype(jnp.bfloat16), w_ref[:, W_P0:W_P1],
                              preferred_element_type=jnp.float32)
                      + b_ref[:, B_P0:B_P1])
    pooled_ref[...] = pooled


# ---------------- parameter packing (plain JAX glue) ----------------
def _padw(a):
    """Pad a weight to (HP, HP) with zeros."""
    a = a.astype(jnp.float32)
    return jnp.pad(a, ((0, HP - a.shape[0]), (0, HP - a.shape[1])))


def _padb(a):
    """Pad a (1, n) bias / LN row to (1, HP) with zeros."""
    a = a.astype(jnp.float32)
    return jnp.pad(a, ((0, 0), (0, HP - a.shape[1])))


def pack_tower_params(p):
    """Pack per-tower tensors into one bf16 weight slab and one f32 bias/LN slab."""
    scale = jnp.float32(1.0 / math.sqrt(H))
    w_slab = jnp.concatenate(
        [_padw(p["wq"] * scale), _padw(p["wk"]), _padw(p["wv"]),
         _padw(p["wo"]), _padw(p["w1"]), _padw(p["w2"]), _padw(p["wp"])],
        axis=1)                                                       # (HP, 896)
    b_slab = jnp.concatenate(
        [_padb(p["bq"] * scale), _padb(p["bk"]), _padb(p["bv"]), _padb(p["bo"]),
         _padb(p["ln1_g"]), _padb(p["ln1_b"]), _padb(p["b1"]), _padb(p["b2"]),
         _padb(p["ln2_g"]), _padb(p["ln2_b"]), _padb(p["bp"])],
        axis=1)                                                       # (1, 1408)
    return w_slab.astype(jnp.bfloat16), b_slab.astype(jnp.float32)


def embed(input_ids, params):
    """Plain-JAX glue: token + position embeddings, embedding layernorm."""
    x = params["word_emb"][input_ids] + params["pos_emb"][None, :, :]
    mu = jnp.mean(x, axis=-1, keepdims=True)
    var = jnp.mean((x - mu) ** 2, axis=-1, keepdims=True)
    return ((x - mu) * lax.rsqrt(var + LN_EPS)
            * params["emb_ln_g"][None] + params["emb_ln_b"][None]).astype(jnp.float32)


# ---------------- deterministic parameter init (no checkpoint load) ----------------
def init_encoder_params(seed):
    key = jax.random.PRNGKey(seed)
    ks = jax.random.split(key, 16)

    def w(k, shape):
        return (0.02 * jax.random.normal(k, shape)).astype(jnp.float32)

    return {
        # embeddings (applied in plain JAX glue)
        "word_emb": w(ks[0], (VOCAB, H)),
        "pos_emb": w(ks[1], (S, H)),
        "emb_ln_g": jnp.ones((1, H), jnp.float32),
        "emb_ln_b": jnp.zeros((1, H), jnp.float32),
        # transformer layer + pooler (packed into slabs for the Pallas kernel)
        "wq": w(ks[2], (H, H)), "bq": jnp.zeros((1, H), jnp.float32),
        "wk": w(ks[3], (H, H)), "bk": jnp.zeros((1, H), jnp.float32),
        "wv": w(ks[4], (H, H)), "bv": jnp.zeros((1, H), jnp.float32),
        "wo": w(ks[5], (H, H)), "bo": jnp.zeros((1, H), jnp.float32),
        "ln1_g": jnp.ones((1, H), jnp.float32), "ln1_b": jnp.zeros((1, H), jnp.float32),
        "w1": w(ks[6], (H, I_FF)), "b1": jnp.zeros((1, I_FF), jnp.float32),
        "w2": w(ks[7], (I_FF, H)), "b2": jnp.zeros((1, H), jnp.float32),
        "ln2_g": jnp.ones((1, H), jnp.float32), "ln2_b": jnp.zeros((1, H), jnp.float32),
        "wp": w(ks[8], (H, H)), "bp": jnp.zeros((1, H), jnp.float32),
    }


# ---------------- forward: one pallas_call with a grid over the two towers ----------------
@jax.jit
def mixblink_forward(mention_ids, entity_ids, mention_mask, entity_mask,
                     mention_params, entity_params):
    """BiEncoder forward: encode both sides + dot-product in-batch scores."""
    m_emb = embed(mention_ids, mention_params)                       # (B, S, H)
    e_emb = embed(entity_ids, entity_params)

    x_all = jnp.stack([m_emb, e_emb])                                # (2, B, S, H)
    x_all = jnp.pad(x_all, ((0, 0), (0, 0), (0, 0), (0, HP - H)))    # lane-pad to 128
    x_all = x_all.astype(jnp.bfloat16)

    mask_all = jnp.stack([mention_mask, entity_mask]).astype(jnp.int32)  # (2, B, S)

    mw, mb = pack_tower_params(mention_params)
    ew, eb = pack_tower_params(entity_params)
    w_all = jnp.stack([mw, ew])                                      # (2, HP, 896) bf16
    b_all = jnp.stack([mb, eb])                                      # (2, 1, 1408) f32

    hidden, pooled = pl.pallas_call(
        biencoder_kernel,
        out_shape=(
            jax.ShapeDtypeStruct((N_TOWERS, BS, HP), jnp.float32),
            jax.ShapeDtypeStruct((N_TOWERS, B, HP), jnp.float32),
        ),
        grid=(N_TOWERS,),
        in_specs=[
            pl.BlockSpec((None, B, S, HP), lambda t: (t, 0, 0, 0)),
            pl.BlockSpec((None, B, S), lambda t: (t, 0, 0)),
            pl.BlockSpec((None, HP, W_COLS), lambda t: (t, 0, 0)),
            pl.BlockSpec((None, 1, B_COLS), lambda t: (t, 0, 0)),
        ],
        out_specs=(
            pl.BlockSpec((None, BS, HP), lambda t: (t, 0, 0)),
            pl.BlockSpec((None, B, HP), lambda t: (t, 0, 0)),
        ),
        compiler_params=pltpu.CompilerParams(
            dimension_semantics=("parallel",)),                      # 2 TCs on v7x
    )(x_all, mask_all, w_all, b_all)

    # Score epilogue decoupled from the kernel (tiny (B,H)x(H,B) matmul in XLA),
    # so the two towers have no dependency inside the pallas_call.
    pooled_m = pooled[0, :, :H]
    pooled_e = pooled[1, :, :H]
    scores = jnp.dot(pooled_m, pooled_e.T, preferred_element_type=jnp.float32)

    hidden_m = hidden[0, :, :H].reshape(B, S, H)
    hidden_e = hidden[1, :, :H].reshape(B, S, H)

    return {
        "mention_last_hidden_state": hidden_m,
        "mention_pooler_output": pooled_m,
        "entity_last_hidden_state": hidden_e,
        "entity_pooler_output": pooled_e,
        "scores": scores,
    }


if __name__ == "__main__":
    key = jax.random.PRNGKey(0)
    k_m, k_e = jax.random.split(key)
    mention_input_ids = jax.random.randint(k_m, (B, S), 0, VOCAB, dtype=jnp.int32)
    entity_input_ids = jax.random.randint(k_e, (B, S), 0, VOCAB, dtype=jnp.int32)
    mention_mask = jnp.ones((B, S), jnp.int32)
    entity_mask = jnp.ones((B, S), jnp.int32)

    mention_params = init_encoder_params(1)
    entity_params = init_encoder_params(2)

    out = mixblink_forward(mention_input_ids, entity_input_ids,
                           mention_mask, entity_mask,
                           mention_params, entity_params)
    jax.block_until_ready(out)

    assert out["scores"].shape == (B, B)
    assert out["mention_pooler_output"].shape == (B, H)
    assert out["entity_pooler_output"].shape == (B, H)
    assert out["mention_last_hidden_state"].shape == (B, S, H)
    assert out["entity_last_hidden_state"].shape == (B, S, H)
    assert bool(jnp.all(jnp.isfinite(out["scores"])))
    assert bool(jnp.all(jnp.isfinite(out["mention_last_hidden_state"])))
    assert bool(jnp.all(jnp.isfinite(out["entity_last_hidden_state"])))
    print("KERNEL_OK")
</pallas_src>

<mosaic_0001>
module attributes {stable_mosaic.version = 11 : i64} {
  func.func @biencoder_kernel(%arg0: i32, %arg1: memref<1x2x8x128xbf16, #tpu.memory_space<vmem>>, %arg2: memref<1x2x8xi32, #tpu.memory_space<vmem>>, %arg3: memref<1x128x896xbf16, #tpu.memory_space<vmem>>, %arg4: memref<1x1x1408xf32, #tpu.memory_space<vmem>>, %arg5: memref<1x16x128xf32, #tpu.memory_space<vmem>>, %arg6: memref<1x2x128xf32, #tpu.memory_space<vmem>>) attributes {dimension_semantics = [#tpu.dimension_semantics<parallel>], iteration_bounds = array<i64: 2>, scalar_prefetch = 0 : i64, scratch_operands = 0 : i64, tpu.core_type = #tpu.core_type<tc>, window_params = [{transform_indices = @transform_0, window_bounds = array<i64: 1, 2, 8, 128>}, {transform_indices = @transform_1, window_bounds = array<i64: 1, 2, 8>}, {transform_indices = @transform_2, window_bounds = array<i64: 1, 128, 896>}, {transform_indices = @transform_3, window_bounds = array<i64: 1, 1, 1408>}, {transform_indices = @transform_4, window_bounds = array<i64: 1, 16, 128>}, {transform_indices = @transform_5, window_bounds = array<i64: 1, 2, 128>}]} {
    %0 = tpu.iota {dimensions = array<i32: 1>} : vector<1x128xi32>
    %c32_i32 = arith.constant 32 : i32
    %1 = vector.broadcast %c32_i32 : i32 to vector<1x128xi32>
    %2 = arith.cmpi slt, %0, %1 : vector<1x128xi32>
    %3 = arith.extui %2 : vector<1x128xi1> to vector<1x128xi32>
    %4 = arith.sitofp %3 : vector<1x128xi32> to vector<1x128xf32>
    %c0 = arith.constant 0 : index
    %c0_0 = arith.constant 0 : index
    %c0_1 = arith.constant 0 : index
    %c0_2 = arith.constant 0 : index
    %5 = vector.load %arg1[%c0, %c0_0, %c0_1, %c0_2] : memref<1x2x8x128xbf16, #tpu.memory_space<vmem>>, vector<1x2x8x128xbf16>
    %6 = vector.shape_cast %5 : vector<1x2x8x128xbf16> to vector<2x8x128xbf16>
    %7 = vector.shape_cast %6 : vector<2x8x128xbf16> to vector<16x128xbf16>
    %c0_3 = arith.constant 0 : index
    %c0_4 = arith.constant 0 : index
    %c0_5 = arith.constant 0 : index
    %8 = vector.load %arg3[%c0_3, %c0_4, %c0_5] : memref<1x128x896xbf16, #tpu.memory_space<vmem>>, vector<1x128x384xbf16>
    %9 = vector.shape_cast %8 : vector<1x128x384xbf16> to vector<128x384xbf16>
    %cst = arith.constant dense<0.000000e+00> : vector<16x384xf32>
    %10 = tpu.matmul %7, %9, %cst {dimension_numbers = #tpu.dot_dimension_numbers<[1], [0], [0], [1], [0, 0, 1, 1], [], []>} : vector<16x128xbf16>, vector<128x384xbf16>, vector<16x384xf32> -> vector<16x384xf32>
    %c0_6 = arith.constant 0 : index
    %c0_7 = arith.constant 0 : index
    %c0_8 = arith.constant 0 : index
    %11 = vector.load %arg4[%c0_6, %c0_7, %c0_8] : memref<1x1x1408xf32, #tpu.memory_space<vmem>>, vector<1x1x384xf32>
    %12 = vector.shape_cast %11 : vector<1x1x384xf32> to vector<1x384xf32>
    %13 = vector.broadcast %12 : vector<1x384xf32> to vector<16x384xf32>
    %14 = arith.addf %10, %13 : vector<16x384xf32>
    %15 = vector.extract_strided_slice %14 {offsets = [0, 0], sizes = [16, 128], strides = [1, 1]} : vector<16x384xf32> to vector<16x128xf32>
    %16 = vector.shape_cast %15 : vector<16x128xf32> to vector<2x8x128xf32>
    %17 = arith.truncf %16 : vector<2x8x128xf32> to vector<2x8x128xbf16>
    %18 = vector.extract_strided_slice %14 {offsets = [0, 128], sizes = [16, 128], strides = [1, 1]} : vector<16x384xf32> to vector<16x128xf32>
    %19 = vector.shape_cast %18 : vector<16x128xf32> to vector<2x8x128xf32>
    %20 = arith.truncf %19 : vector<2x8x128xf32> to vector<2x8x128xbf16>
    %21 = vector.extract_strided_slice %14 {offsets = [0, 256], sizes = [16, 128], strides = [1, 1]} : vector<16x384xf32> to vector<16x128xf32>
    %22 = vector.shape_cast %21 : vector<16x128xf32> to vector<2x8x128xf32>
    %23 = arith.truncf %22 : vector<2x8x128xf32> to vector<2x8x128xbf16>
    "tpu.trace_start"() <{level = 10 : i32, message = "bqd,bkd->bqk"}> : () -> ()
    %cst_9 = arith.constant dense<0.000000e+00> : vector<2x8x8xf32>
    %24 = tpu.matmul %17, %20, %cst_9 {dimension_numbers = #tpu.dot_dimension_numbers<[2], [2], [1], [1], [0, 0, 0, 1, 1, 1], [0], [0]>} : vector<2x8x128xbf16>, vector<2x8x128xbf16>, vector<2x8x8xf32> -> vector<2x8x8xf32>
    "tpu.trace_stop"() : () -> ()
    %c0_10 = arith.constant 0 : index
    %c0_11 = arith.constant 0 : index
    %c0_12 = arith.constant 0 : index
    %25 = vector.load %arg2[%c0_10, %c0_11, %c0_12] : memref<1x2x8xi32, #tpu.memory_space<vmem>>, vector<1x2x8xi32>
    %26 = vector.shape_cast %25 : vector<1x2x8xi32> to vector<2x8xi32>
    %c0_i32 = arith.constant 0 : i32
    %27 = vector.broadcast %c0_i32 : i32 to vector<2x8xi32>
    %28 = arith.cmpi sgt, %26, %27 : vector<2x8xi32>
    %cst_13 = arith.constant 0.000000e+00 : f32
    %cst_14 = arith.constant -1.000000e+30 : f32
    %29 = vector.broadcast %cst_13 : f32 to vector<2x8xf32>
    %30 = vector.broadcast %cst_14 : f32 to vector<2x8xf32>
    %31 = arith.select %28, %29, %30 : vector<2x8xi1>, vector<2x8xf32>
    %32 = vector.shape_cast %31 : vector<2x8xf32> to vector<2x1x8xf32>
    %33 = vector.broadcast %32 : vector<2x1x8xf32> to vector<2x8x8xf32>
    %34 = arith.addf %24, %33 : vector<2x8x8xf32>
    %cst_15 = arith.constant dense<0xFF800000> : vector<2x8xf32>
    %35 = vector.multi_reduction <maximumf>, %34, %cst_15 [2] : vector<2x8x8xf32> to vector<2x8xf32>
    %36 = vector.shape_cast %35 : vector<2x8xf32> to vector<2x8x1xf32>
    %37 = vector.broadcast %36 : vector<2x8x1xf32> to vector<2x8x8xf32>
    %38 = arith.subf %34, %37 : vector<2x8x8xf32>
    %39 = math.exp %38 : vector<2x8x8xf32>
    %cst_16 = arith.constant dense<0.000000e+00> : vector<2x8xf32>
    %40 = vector.multi_reduction <add>, %39, %cst_16 [2] : vector<2x8x8xf32> to vector<2x8xf32>
    %41 = vector.shape_cast %40 : vector<2x8xf32> to vector<2x8x1xf32>
    %42 = tpu.reciprocal %41 {approx = true} : vector<2x8x1xf32> -> vector<2x8x1xf32>
    %43 = vector.broadcast %42 : vector<2x8x1xf32> to vector<2x8x8xf32>
    %44 = arith.mulf %39, %43 : vector<2x8x8xf32>
    %45 = arith.truncf %44 : vector<2x8x8xf32> to vector<2x8x8xbf16>
    "tpu.trace_start"() <{level = 10 : i32, message = "bqk,bkd->bqd"}> : () -> ()
    %cst_17 = arith.constant dense<0.000000e+00> : vector<2x8x128xf32>
    %46 = tpu.matmul %45, %23, %cst_17 {dimension_numbers = #tpu.dot_dimension_numbers<[2], [1], [1], [2], [0, 0, 0, 1, 1, 2], [0], [0]>} : vector<2x8x8xbf16>, vector<2x8x128xbf16>, vector<2x8x128xf32> -> vector<2x8x128xf32>
    "tpu.trace_stop"() : () -> ()
    %47 = vector.shape_cast %46 : vector<2x8x128xf32> to vector<16x128xf32>
    %48 = arith.truncf %47 : vector<16x128xf32> to vector<16x128xbf16>
    %c0_18 = arith.constant 0 : index
    %c0_19 = arith.constant 0 : index
    %c384 = arith.constant 384 : index
    %49 = vector.load %arg3[%c0_18, %c0_19, %c384] : memref<1x128x896xbf16, #tpu.memory_space<vmem>>, vector<1x128x128xbf16>
    %50 = vector.shape_cast %49 : vector<1x128x128xbf16> to vector<128x128xbf16>
    %cst_20 = arith.constant dense<0.000000e+00> : vector<16x128xf32>
    %51 = tpu.matmul %48, %50, %cst_20 {dimension_numbers = #tpu.dot_dimension_numbers<[1], [0], [0], [1], [0, 0, 1, 1], [], []>} : vector<16x128xbf16>, vector<128x128xbf16>, vector<16x128xf32> -> vector<16x128xf32>
    %c0_21 = arith.constant 0 : index
    %c0_22 = arith.constant 0 : index
    %c384_23 = arith.constant 384 : index
    %52 = vector.load %arg4[%c0_21, %c0_22, %c384_23] : memref<1x1x1408xf32, #tpu.memory_space<vmem>>, vector<1x1x128xf32>
    %53 = vector.shape_cast %52 : vector<1x1x128xf32> to vector<1x128xf32>
    %54 = vector.broadcast %53 : vector<1x128xf32> to vector<16x128xf32>
    %55 = arith.addf %51, %54 : vector<16x128xf32>
    %56 = arith.extf %7 : vector<16x128xbf16> to vector<16x128xf32>
    %57 = arith.addf %56, %55 : vector<16x128xf32>
    %c0_24 = arith.constant 0 : index
    %c0_25 = arith.constant 0 : index
    %c512 = arith.constant 512 : index
    %58 = vector.load %arg4[%c0_24, %c0_25, %c512] : memref<1x1x1408xf32, #tpu.memory_space<vmem>>, vector<1x1x128xf32>
    %59 = vector.shape_cast %58 : vector<1x1x128xf32> to vector<1x128xf32>
    %c0_26 = arith.constant 0 : index
    %c0_27 = arith.constant 0 : index
    %c640 = arith.constant 640 : index
    %60 = vector.load %arg4[%c0_26, %c0_27, %c640] : memref<1x1x1408xf32, #tpu.memory_space<vmem>>, vector<1x1x128xf32>
    %61 = vector.shape_cast %60 : vector<1x1x128xf32> to vector<1x128xf32>
    %cst_28 = arith.constant dense<0.000000e+00> : vector<16xf32>
    %62 = vector.multi_reduction <add>, %57, %cst_28 [1] : vector<16x128xf32> to vector<16xf32>
    %63 = vector.shape_cast %62 : vector<16xf32> to vector<16x1xf32>
    %cst_29 = arith.constant 3.125000e-02 : f32
    %64 = vector.broadcast %cst_29 : f32 to vector<16x1xf32>
    %65 = arith.mulf %63, %64 : vector<16x1xf32>
    %66 = vector.broadcast %65 : vector<16x1xf32> to vector<16x128xf32>
    %67 = arith.subf %57, %66 : vector<16x128xf32>
    %68 = vector.broadcast %4 : vector<1x128xf32> to vector<16x128xf32>
    %69 = arith.mulf %67, %68 : vector<16x128xf32>
    %70 = arith.mulf %69, %69 : vector<16x128xf32>
    %cst_30 = arith.constant dense<0.000000e+00> : vector<16xf32>
    %71 = vector.multi_reduction <add>, %70, %cst_30 [1] : vector<16x128xf32> to vector<16xf32>
    %72 = vector.shape_cast %71 : vector<16xf32> to vector<16x1xf32>
    %cst_31 = arith.constant 3.125000e-02 : f32
    %73 = vector.broadcast %cst_31 : f32 to vector<16x1xf32>
    %74 = arith.mulf %72, %73 : vector<16x1xf32>
    %cst_32 = arith.constant 9.99999996E-13 : f32
    %75 = vector.broadcast %cst_32 : f32 to vector<16x1xf32>
    %76 = arith.addf %74, %75 : vector<16x1xf32>
    %77 = math.rsqrt %76 : vector<16x1xf32>
    %78 = vector.broadcast %77 : vector<16x1xf32> to vector<16x128xf32>
    %79 = arith.mulf %69, %78 : vector<16x128xf32>
    %80 = vector.broadcast %59 : vector<1x128xf32> to vector<16x128xf32>
    %81 = arith.mulf %79, %80 : vector<16x128xf32>
    %82 = vector.broadcast %61 : vector<1x128xf32> to vector<16x128xf32>
    %83 = arith.addf %81, %82 : vector<16x128xf32>
    %84 = arith.truncf %83 : vector<16x128xf32> to vector<16x128xbf16>
    %c0_33 = arith.constant 0 : index
    %c0_34 = arith.constant 0 : index
    %c512_35 = arith.constant 512 : index
    %85 = vector.load %arg3[%c0_33, %c0_34, %c512_35] : memref<1x128x896xbf16, #tpu.memory_space<vmem>>, vector<1x128x128xbf16>
    %86 = vector.shape_cast %85 : vector<1x128x128xbf16> to vector<128x128xbf16>
    %cst_36 = arith.constant dense<0.000000e+00> : vector<16x128xf32>
    %87 = tpu.matmul %84, %86, %cst_36 {dimension_numbers = #tpu.dot_dimension_numbers<[1], [0], [0], [1], [0, 0, 1, 1], [], []>} : vector<16x128xbf16>, vector<128x128xbf16>, vector<16x128xf32> -> vector<16x128xf32>
    %c0_37 = arith.constant 0 : index
    %c0_38 = arith.constant 0 : index
    %c768 = arith.constant 768 : index
    %88 = vector.load %arg4[%c0_37, %c0_38, %c768] : memref<1x1x1408xf32, #tpu.memory_space<vmem>>, vector<1x1x128xf32>
    %89 = vector.shape_cast %88 : vector<1x1x128xf32> to vector<1x128xf32>
    %90 = vector.broadcast %89 : vector<1x128xf32> to vector<16x128xf32>
    %91 = arith.addf %87, %90 : vector<16x128xf32>
    %cst_39 = arith.constant 5.000000e-01 : f32
    %92 = vector.broadcast %cst_39 : f32 to vector<16x128xf32>
    %93 = arith.mulf %92, %91 : vector<16x128xf32>
    %cst_40 = arith.constant 4.471500e-02 : f32
    %94 = vector.broadcast %cst_40 : f32 to vector<16x128xf32>
    %95 = arith.mulf %94, %91 : vector<16x128xf32>
    %96 = arith.mulf %95, %91 : vector<16x128xf32>
    %97 = arith.mulf %96, %91 : vector<16x128xf32>
    %98 = arith.addf %91, %97 : vector<16x128xf32>
    %cst_41 = arith.constant 0.797884583 : f32
    %99 = vector.broadcast %cst_41 : f32 to vector<16x128xf32>
    %100 = arith.mulf %99, %98 : vector<16x128xf32>
    %101 = math.tanh %100 : vector<16x128xf32>
    %cst_42 = arith.constant 1.000000e+00 : f32
    %102 = vector.broadcast %cst_42 : f32 to vector<16x128xf32>
    %103 = arith.addf %102, %101 : vector<16x128xf32>
    %104 = arith.mulf %93, %103 : vector<16x128xf32>
    %105 = arith.truncf %104 : vector<16x128xf32> to vector<16x128xbf16>
    %c0_43 = arith.constant 0 : index
    %c0_44 = arith.constant 0 : index
    %c640_45 = arith.constant 640 : index
    %106 = vector.load %arg3[%c0_43, %c0_44, %c640_45] : memref<1x128x896xbf16, #tpu.memory_space<vmem>>, vector<1x128x128xbf16>
    %107 = vector.shape_cast %106 : vector<1x128x128xbf16> to vector<128x128xbf16>
    %cst_46 = arith.constant dense<0.000000e+00> : vector<16x128xf32>
    %108 = tpu.matmul %105, %107, %cst_46 {dimension_numbers = #tpu.dot_dimension_numbers<[1], [0], [0], [1], [0, 0, 1, 1], [], []>} : vector<16x128xbf16>, vector<128x128xbf16>, vector<16x128xf32> -> vector<16x128xf32>
    %c0_47 = arith.constant 0 : index
    %c0_48 = arith.constant 0 : index
    %c896 = arith.constant 896 : index
    %109 = vector.load %arg4[%c0_47, %c0_48, %c896] : memref<1x1x1408xf32, #tpu.memory_space<vmem>>, vector<1x1x128xf32>
    %110 = vector.shape_cast %109 : vector<1x1x128xf32> to vector<1x128xf32>
    %111 = vector.broadcast %110 : vector<1x128xf32> to vector<16x128xf32>
    %112 = arith.addf %108, %111 : vector<16x128xf32>
    %113 = arith.addf %83, %112 : vector<16x128xf32>
    %c0_49 = arith.constant 0 : index
    %c0_50 = arith.constant 0 : index
    %c1024 = arith.constant 1024 : index
    %114 = vector.load %arg4[%c0_49, %c0_50, %c1024] : memref<1x1x1408xf32, #tpu.memory_space<vmem>>, vector<1x1x128xf32>
    %115 = vector.shape_cast %114 : vector<1x1x128xf32> to vector<1x128xf32>
    %c0_51 = arith.constant 0 : index
    %c0_52 = arith.constant 0 : index
    %c1152 = arith.constant 1152 : index
    %116 = vector.load %arg4[%c0_51, %c0_52, %c1152] : memref<1x1x1408xf32, #tpu.memory_space<vmem>>, vector<1x1x128xf32>
    %117 = vector.shape_cast %116 : vector<1x1x128xf32> to vector<1x128xf32>
    %cst_53 = arith.constant dense<0.000000e+00> : vector<16xf32>
    %118 = vector.multi_reduction <add>, %113, %cst_53 [1] : vector<16x128xf32> to vector<16xf32>
    %119 = vector.shape_cast %118 : vector<16xf32> to vector<16x1xf32>
    %cst_54 = arith.constant 3.125000e-02 : f32
    %120 = vector.broadcast %cst_54 : f32 to vector<16x1xf32>
    %121 = arith.mulf %119, %120 : vector<16x1xf32>
    %122 = vector.broadcast %121 : vector<16x1xf32> to vector<16x128xf32>
    %123 = arith.subf %113, %122 : vector<16x128xf32>
    %124 = vector.broadcast %4 : vector<1x128xf32> to vector<16x128xf32>
    %125 = arith.mulf %123, %124 : vector<16x128xf32>
    %126 = arith.mulf %125, %125 : vector<16x128xf32>
    %cst_55 = arith.constant dense<0.000000e+00> : vector<16xf32>
    %127 = vector.multi_reduction <add>, %126, %cst_55 [1] : vector<16x128xf32> to vector<16xf32>
    %128 = vector.shape_cast %127 : vector<16xf32> to vector<16x1xf32>
    %cst_56 = arith.constant 3.125000e-02 : f32
    %129 = vector.broadcast %cst_56 : f32 to vector<16x1xf32>
    %130 = arith.mulf %128, %129 : vector<16x1xf32>
    %cst_57 = arith.constant 9.99999996E-13 : f32
    %131 = vector.broadcast %cst_57 : f32 to vector<16x1xf32>
    %132 = arith.addf %130, %131 : vector<16x1xf32>
    %133 = math.rsqrt %132 : vector<16x1xf32>
    %134 = vector.broadcast %133 : vector<16x1xf32> to vector<16x128xf32>
    %135 = arith.mulf %125, %134 : vector<16x128xf32>
    %136 = vector.broadcast %115 : vector<1x128xf32> to vector<16x128xf32>
    %137 = arith.mulf %135, %136 : vector<16x128xf32>
    %138 = vector.broadcast %117 : vector<1x128xf32> to vector<16x128xf32>
    %139 = arith.addf %137, %138 : vector<16x128xf32>
    %c0_58 = arith.constant 0 : index
    %c0_59 = arith.constant 0 : index
    %c0_60 = arith.constant 0 : index
    %140 = vector.load %arg5[%c0_58, %c0_59, %c0_60] : memref<1x16x128xf32, #tpu.memory_space<vmem>>, vector<1x16x128xf32>
    %141 = vector.shape_cast %140 : vector<1x16x128xf32> to vector<16x128xf32>
    %142 = vector.shape_cast %139 : vector<16x128xf32> to vector<1x16x128xf32>
    tpu.vector_store %arg5[%c0_58, %c0_59, %c0_60], %142 {strides = array<i32>} : memref<1x16x128xf32, #tpu.memory_space<vmem>>, vector<1x16x128xf32>,
    %143 = vector.shape_cast %139 : vector<16x128xf32> to vector<2x8x128xf32>
    %144 = vector.extract_strided_slice %143 {offsets = [0, 0, 0], sizes = [2, 1, 128], strides = [1, 1, 1]} : vector<2x8x128xf32> to vector<2x1x128xf32>
    %145 = vector.shape_cast %144 : vector<2x1x128xf32> to vector<2x128xf32>
    %146 = arith.truncf %145 : vector<2x128xf32> to vector<2x128xbf16>
    %c0_61 = arith.constant 0 : index
    %c0_62 = arith.constant 0 : index
    %c768_63 = arith.constant 768 : index
    %147 = vector.load %arg3[%c0_61, %c0_62, %c768_63] : memref<1x128x896xbf16, #tpu.memory_space<vmem>>, vector<1x128x128xbf16>
    %148 = vector.shape_cast %147 : vector<1x128x128xbf16> to vector<128x128xbf16>
    %cst_64 = arith.constant dense<0.000000e+00> : vector<2x128xf32>
    %149 = tpu.matmul %146, %148, %cst_64 {dimension_numbers = #tpu.dot_dimension_numbers<[1], [0], [0], [1], [0, 0, 1, 1], [], []>} : vector<2x128xbf16>, vector<128x128xbf16>, vector<2x128xf32> -> vector<2x128xf32>
    %c0_65 = arith.constant 0 : index
    %c0_66 = arith.constant 0 : index
    %c1280 = arith.constant 1280 : index
    %150 = vector.load %arg4[%c0_65, %c0_66, %c1280] : memref<1x1x1408xf32, #tpu.memory_space<vmem>>, vector<1x1x128xf32>
    %151 = vector.shape_cast %150 : vector<1x1x128xf32> to vector<1x128xf32>
    %152 = vector.broadcast %151 : vector<1x128xf32> to vector<2x128xf32>
    %153 = arith.addf %149, %152 : vector<2x128xf32>
    %154 = math.tanh %153 : vector<2x128xf32>
    %c0_67 = arith.constant 0 : index
    %c0_68 = arith.constant 0 : index
    %c0_69 = arith.constant 0 : index
    %155 = vector.load %arg6[%c0_67, %c0_68, %c0_69] : memref<1x2x128xf32, #tpu.memory_space<vmem>>, vector<1x2x128xf32>
    %156 = vector.shape_cast %155 : vector<1x2x128xf32> to vector<2x128xf32>
    %157 = vector.shape_cast %154 : vector<2x128xf32> to vector<1x2x128xf32>
    tpu.vector_store %arg6[%c0_67, %c0_68, %c0_69], %157 {strides = array<i32>} : memref<1x2x128xf32, #tpu.memory_space<vmem>>, vector<1x2x128xf32>,
    return
  }
  func.func @transform_0(%arg0: i32) -> (i32, i32, i32, i32) {
    %c0_i32 = arith.constant 0 : i32
    %c0_i32_0 = arith.constant 0 : i32
    %c0_i32_1 = arith.constant 0 : i32
    %c0_i32_2 = arith.constant 0 : i32
    return %arg0, %c0_i32, %c0_i32_0, %c0_i32_1 : i32, i32, i32, i32
  }
  func.func @transform_1(%arg0: i32) -> (i32, i32, i32) {
    %c0_i32 = arith.constant 0 : i32
    %c0_i32_0 = arith.constant 0 : i32
    %c0_i32_1 = arith.constant 0 : i32
    return %arg0, %c0_i32, %c0_i32_0 : i32, i32, i32
  }
  func.func @transform_2(%arg0: i32) -> (i32, i32, i32) {
    %c0_i32 = arith.constant 0 : i32
    %c0_i32_0 = arith.constant 0 : i32
    %c0_i32_1 = arith.constant 0 : i32
    return %arg0, %c0_i32, %c0_i32_0 : i32, i32, i32
  }
  func.func @transform_3(%arg0: i32) -> (i32, i32, i32) {
    %c0_i32 = arith.constant 0 : i32
    %c0_i32_0 = arith.constant 0 : i32
    %c0_i32_1 = arith.constant 0 : i32
    return %arg0, %c0_i32, %c0_i32_0 : i32, i32, i32
  }
  func.func @transform_4(%arg0: i32) -> (i32, i32, i32) {
    %c0_i32 = arith.constant 0 : i32
    %c0_i32_0 = arith.constant 0 : i32
    %c0_i32_1 = arith.constant 0 : i32
    return %arg0, %c0_i32, %c0_i32_0 : i32, i32, i32
  }
  func.func @transform_5(%arg0: i32) -> (i32, i32, i32) {
    %c0_i32 = arith.constant 0 : i32
    %c0_i32_0 = arith.constant 0 : i32
    %c0_i32_1 = arith.constant 0 : i32
    return %arg0, %c0_i32, %c0_i32_0 : i32, i32, i32
  }
}

</mosaic_0001>

<llo_original>
// kernel: mixblink_forward.1
$region0: #{mixblink_forward.1}
  #allocation0 [shape = 'u32[]', space=smem, size = 0x4, offset = 0x4, fixed_abs, tag = 'smem constant byte address 0x4 - core index']
  #allocation1 [shape = 'u32[144,128]{1,0:T(1,128)}', space=vmem, size = 0x12000, scoped, tag = 'internal scratch']
  %s0 = inlined_call_operand.vmem [shape: bf16[2,2,8,128], index: 0, kind: input, shape index: {}]
  %s1 = inlined_call_operand.vmem [shape: s32[2,2,8], index: 1, kind: input, shape index: {}]
  %s2 = inlined_call_operand.vmem [shape: bf16[2,128,896], index: 2, kind: input, shape index: {}]
  %s3 = inlined_call_operand.vmem [shape: f32[2,1,1408], index: 3, kind: input, shape index: {}]
  %s4 = inlined_call_operand.vmem [shape: f32[2,16,128], index: 4, kind: output, shape index: {0}]
  %s5 = inlined_call_operand.vmem [shape: f32[2,2,128], index: 5, kind: output, shape index: {1}]
  %6 = xla_tuple %s4, %s5
  %s7 = sld [smem:[#allocation0]]
  $region57: #{mixblink_forward.1} parent=0
    _
  %s9 = ssub.s32 1, %s7
  %s10 = scalar_select 0, %s9, %s7
  loop: start=0, step=1, limit=4
  $region2: #{mixblink_forward.1} parent=0 // loop_pre_header
    _
  $region3: #{mixblink_forward.1} parent=0 // loop_header
    %s12 = sphi 0, %s16
    %p13 = scmp.ge.s32.totalorder %s12, 4
    %s22 = sphi 0, %s24
    %s25 = sphi 0, %s22
    %s26 = sphi 0, %s25
    %s42 = sphi 0, %s26
    %s48 = sphi 0, %s50
    %s51 = sphi 0, %s48
    %s52 = sphi 0, %s51
    %s68 = sphi 0, %s52
    %s74 = sphi 0, %s76
    %s77 = sphi 0, %s74
    %s78 = sphi 0, %s77
    %s94 = sphi 0, %s78
    %s100 = sphi 0, %s102
    %s103 = sphi 0, %s100
    %s104 = sphi 0, %s103
    %s120 = sphi 0, %s104
    %s126 = sphi 0, %s128
    %s129 = sphi 0, %s126
    %s130 = sphi 0, %s129
    %s146 = sphi 0, %s130
    %s152 = sphi 0, %s154
    %s155 = sphi 0, %s152
    %s156 = sphi 0, %s155
    %s172 = sphi 0, %s156
  $region4: #{mixblink_forward.1} parent=0 // loop_header_branch
    %15 = sbr.rel (%p13) target = $region8
  $region5: #{mixblink_forward.1} parent=0 // loop_body
    %s17 = ssub.s32 %s12, 1
    %s18 = ssub.s32 %s12, 2
    %s19 = sadd.s32 %s12, 1
    %s20 = ssub.s32 %s12, %s19
    %p21 = scmp.eq.s32.totalorder %s20, 0
    %s23 = sadd.s32 %s22, 1
    %s24 = scalar_select %p21, %s22, %s23
    %p27 = pneg %p21
    %p28 = scmp.eq.s32.totalorder %s12, 1
    %p29 = por %p27, %p28
    %p30 = scmp.ne.s32.totalorder %s22, %s25
    %p31 = scmp.eq.s32.totalorder %s12, 0
    %p32 = por %p30, %p31
    %p33 = scmp.ne.s32.totalorder %s22, %s25
    %p34 = scmp.eq.s32.totalorder %s17, 1
    %p35 = por %p33, %p34
    %p36 = scmp.ne.s32.totalorder %s25, %s26
    %p37 = scmp.eq.s32.totalorder %s17, 0
    %p38 = por %p36, %p37
    %p39 = scmp.ne.s32.totalorder %s25, %s26
    %p40 = scmp.eq.s32.totalorder %s18, 1
    %p41 = por %p39, %p40
    %p43 = scmp.ne.s32.totalorder %s26, %s42
    %p44 = scmp.eq.s32.totalorder %s18, 0
    %p45 = por %p43, %p44
    %s46 = ssub.s32 %s12, %s19
    %p47 = scmp.eq.s32.totalorder %s46, 0
    %s49 = sadd.s32 %s48, 1
    %s50 = scalar_select %p47, %s48, %s49
    %p53 = pneg %p47
    %p54 = scmp.eq.s32.totalorder %s12, 1
    %p55 = por %p53, %p54
    %p56 = scmp.ne.s32.totalorder %s48, %s51
    %p57 = scmp.eq.s32.totalorder %s12, 0
    %p58 = por %p56, %p57
    %p59 = scmp.ne.s32.totalorder %s48, %s51
    %p60 = scmp.eq.s32.totalorder %s17, 1
    %p61 = por %p59, %p60
    %p62 = scmp.ne.s32.totalorder %s51, %s52
    %p63 = scmp.eq.s32.totalorder %s17, 0
    %p64 = por %p62, %p63
    %p65 = scmp.ne.s32.totalorder %s51, %s52
    %p66 = scmp.eq.s32.totalorder %s18, 1
    %p67 = por %p65, %p66
    %p69 = scmp.ne.s32.totalorder %s52, %s68
    %p70 = scmp.eq.s32.totalorder %s18, 0
    %p71 = por %p69, %p70
    %s72 = ssub.s32 %s12, %s19
    %p73 = scmp.eq.s32.totalorder %s72, 0
    %s75 = sadd.s32 %s74, 1
    %s76 = scalar_select %p73, %s74, %s75
    %p79 = pneg %p73
    %p80 = scmp.eq.s32.totalorder %s12, 1
    %p81 = por %p79, %p80
    %p82 = scmp.ne.s32.totalorder %s74, %s77
    %p83 = scmp.eq.s32.totalorder %s12, 0
    %p84 = por %p82, %p83
    %p85 = scmp.ne.s32.totalorder %s74, %s77
    %p86 = scmp.eq.s32.totalorder %s17, 1
    %p87 = por %p85, %p86
    %p88 = scmp.ne.s32.totalorder %s77, %s78
    %p89 = scmp.eq.s32.totalorder %s17, 0
    %p90 = por %p88, %p89
    %p91 = scmp.ne.s32.totalorder %s77, %s78
    %p92 = scmp.eq.s32.totalorder %s18, 1
    %p93 = por %p91, %p92
    %p95 = scmp.ne.s32.totalorder %s78, %s94
    %p96 = scmp.eq.s32.totalorder %s18, 0
    %p97 = por %p95, %p96
    %s98 = ssub.s32 %s12, %s19
    %p99 = scmp.eq.s32.totalorder %s98, 0
    %s101 = sadd.s32 %s100, 1
    %s102 = scalar_select %p99, %s100, %s101
    %p105 = pneg %p99
    %p106 = scmp.eq.s32.totalorder %s12, 1
    %p107 = por %p105, %p106
    %p108 = scmp.ne.s32.totalorder %s100, %s103
    %p109 = scmp.eq.s32.totalorder %s12, 0
    %p110 = por %p108, %p109
    %p111 = scmp.ne.s32.totalorder %s100, %s103
    %p112 = scmp.eq.s32.totalorder %s17, 1
    %p113 = por %p111, %p112
    %p114 = scmp.ne.s32.totalorder %s103, %s104
    %p115 = scmp.eq.s32.totalorder %s17, 0
    %p116 = por %p114, %p115
    %p117 = scmp.ne.s32.totalorder %s103, %s104
    %p118 = scmp.eq.s32.totalorder %s18, 1
    %p119 = por %p117, %p118
    %p121 = scmp.ne.s32.totalorder %s104, %s120
    %p122 = scmp.eq.s32.totalorder %s18, 0
    %p123 = por %p121, %p122
    %s124 = ssub.s32 %s12, %s19
    %p125 = scmp.eq.s32.totalorder %s124, 0
    %s127 = sadd.s32 %s126, 1
    %s128 = scalar_select %p125, %s126, %s127
    %p131 = pneg %p125
    %p132 = scmp.eq.s32.totalorder %s12, 1
    %p133 = por %p131, %p132
    %p134 = scmp.ne.s32.totalorder %s126, %s129
    %p135 = scmp.eq.s32.totalorder %s12, 0
    %p136 = por %p134, %p135
    %p137 = scmp.ne.s32.totalorder %s126, %s129
    %p138 = scmp.eq.s32.totalorder %s17, 1
    %p139 = por %p137, %p138
    %p140 = scmp.ne.s32.totalorder %s129, %s130
    %p141 = scmp.eq.s32.totalorder %s17, 0
    %p142 = por %p140, %p141
    %p143 = scmp.ne.s32.totalorder %s129, %s130
    %p144 = scmp.eq.s32.totalorder %s18, 1
    %p145 = por %p143, %p144
    %p147 = scmp.ne.s32.totalorder %s130, %s146
    %p148 = scmp.eq.s32.totalorder %s18, 0
    %p149 = por %p147, %p148
    %s150 = ssub.s32 %s12, %s19
    %p151 = scmp.eq.s32.totalorder %s150, 0
    %s153 = sadd.s32 %s152, 1
    %s154 = scalar_select %p151, %s152, %s153
    %p157 = pneg %p151
    %p158 = scmp.eq.s32.totalorder %s12, 1
    %p159 = por %p157, %p158
    %p160 = scmp.ne.s32.totalorder %s152, %s155
    %p161 = scmp.eq.s32.totalorder %s12, 0
    %p162 = por %p160, %p161
    %p163 = scmp.ne.s32.totalorder %s152, %s155
    %p164 = scmp.eq.s32.totalorder %s17, 1
    %p165 = por %p163, %p164
    %p166 = scmp.ne.s32.totalorder %s155, %s156
    %p167 = scmp.eq.s32.totalorder %s17, 0
    %p168 = por %p166, %p167
    %p169 = scmp.ne.s32.totalorder %s155, %s156
    %p170 = scmp.eq.s32.totalorder %s18, 1
    %p171 = por %p169, %p170
    %p173 = scmp.ne.s32.totalorder %s156, %s172
    %p174 = scmp.eq.s32.totalorder %s18, 0
    %p175 = por %p173, %p174
    %p176 = scmp.le.s32.totalorder 1, %s12
    %p177 = scmp.lt.s32.totalorder %s12, 3
    %p178 = pnand %p176, %p177
    %p179 = pneg %p178
    // Predicated region
    $region9: #{mixblink_forward.1} parent=5 // pred_check
      _
    $region10: #{mixblink_forward.1} parent=5 // pred_check_branch
      %181 = sbr.rel (%p178) target = $region12
    $region11: #{mixblink_forward.1} parent=5 // pred_region
      %s182 = ssub.s32 %s12, 1
    $region12: #{mixblink_forward.1} parent=5 // pred_fallthru
      _
    %p183 = scmp.lt.s32.totalorder %s12, 2
    // Predicated region
    $region13: #{mixblink_forward.1} parent=5 // pred_check
      %p184 = pneg %p183
    $region14: #{mixblink_forward.1} parent=5 // pred_check_branch
      %186 = sbr.rel (%p184) target = $region16
    $region15: #{mixblink_forward.1} parent=5 // pred_region
      // Predicated region
      $region17: #{mixblink_forward.1} parent=15 // pred_check
        %p187 = pneg %p32
      $region18: #{mixblink_forward.1} parent=15 // pred_check_branch
        %189 = sbr.rel (%p187) target = $region20
      $region19: #{mixblink_forward.1} parent=15 // pred_region
        %p190 = scmp.lt.s32.totalorder %s12, 1
        %s191 = scalar_select %p190, %s12, 1
        %s192 = smul.addr %s191, 2
        %s193 = smul.addr %s192, 4
        %s194 = scalar_lea.vmem %s0, %s193
      $region20: #{mixblink_forward.1} parent=15 // pred_fallthru
        _
      // Predicated region
      $region21: #{mixblink_forward.1} parent=15 // pred_check
        %p195 = pneg %p58
      $region22: #{mixblink_forward.1} parent=15 // pred_check_branch
        %197 = sbr.rel (%p195) target = $region24
      $region23: #{mixblink_forward.1} parent=15 // pred_region
        %p198 = scmp.lt.s32.totalorder %s12, 1
        %s199 = scalar_select %p198, %s12, 1
        %s200 = smul.addr %s199, 2
        %s201 = scalar_lea.vmem %s1, %s200
      $region24: #{mixblink_forward.1} parent=15 // pred_fallthru
        _
      // Predicated region
      $region25: #{mixblink_forward.1} parent=15 // pred_check
        %p202 = pneg %p84
      $region26: #{mixblink_forward.1} parent=15 // pred_check_branch
        %204 = sbr.rel (%p202) target = $region28
      $region27: #{mixblink_forward.1} parent=15 // pred_region
        %p205 = scmp.lt.s32.totalorder %s12, 1
        %s206 = scalar_select %p205, %s12, 1
        %s207 = smul.addr %s206, 112
        %s208 = smul.addr %s207, 4
        %s209 = scalar_lea.vmem %s2, %s208
      $region28: #{mixblink_forward.1} parent=15 // pred_fallthru
        _
      // Predicated region
      $region29: #{mixblink_forward.1} parent=15 // pred_check
        %p210 = pneg %p110
      $region30: #{mixblink_forward.1} parent=15 // pred_check_branch
        %212 = sbr.rel (%p210) target = $region32
      $region31: #{mixblink_forward.1} parent=15 // pred_region
        %p213 = scmp.lt.s32.totalorder %s12, 1
        %s214 = scalar_select %p213, %s12, 1
        %s215 = smul.addr %s214, 11
        %s216 = scalar_lea.vmem %s3, %s215
      $region32: #{mixblink_forward.1} parent=15 // pred_fallthru
        _
    $region16: #{mixblink_forward.1} parent=5 // pred_fallthru
      _
    %p217 = scmp.le.s32.totalorder 1, %s12
    %p218 = scmp.lt.s32.totalorder %s12, 3
    %p219 = pnand %p217, %p218
    %p220 = pneg %p219
    // Predicated region
    $region33: #{mixblink_forward.1} parent=5 // pred_check
      _
    $region34: #{mixblink_forward.1} parent=5 // pred_check_branch
      %222 = sbr.rel (%p219) target = $region36
    $region35: #{mixblink_forward.1} parent=5 // pred_region
      %s223 = ssub.s32 %s12, 1
      %p224 = scmp.lt.s32.totalorder %s17, 1
      %s225 = scalar_select %p224, %s17, 1
      %s226 = smul.addr %s225, 2
      %s227 = smul.addr %s226, 4
      %s228 = scalar_lea.vmem %s0, %s227
      %p229 = pneg %p38
      %p230 = pneg %p35
      %p231 = scmp.lt.s32.totalorder %s17, 1
      %s232 = scalar_select %p231, %s17, 1
      %s233 = smul.addr %s232, 2
      %s234 = scalar_lea.vmem %s1, %s233
      %p235 = pneg %p64
      %p236 = pneg %p61
      %p237 = scmp.lt.s32.totalorder %s17, 1
      %s238 = scalar_select %p237, %s17, 1
      %s239 = smul.addr %s238, 112
      %s240 = smul.addr %s239, 4
      %s241 = scalar_lea.vmem %s2, %s240
      %p242 = pneg %p90
      %p243 = pneg %p87
      %p244 = scmp.lt.s32.totalorder %s17, 1
      %s245 = scalar_select %p244, %s17, 1
      %s246 = smul.addr %s245, 11
      %s247 = scalar_lea.vmem %s3, %s246
      %p248 = pneg %p116
      %p249 = pneg %p113
      %p250 = pneg %p142
      %p251 = pneg %p139
      %p252 = scmp.lt.s32.totalorder %s17, 1
      %s253 = scalar_select %p252, %s17, 1
      %s254 = smul.addr %s253, 2
      %s255 = smul.addr %s254, 8
      %s256 = scalar_lea.vmem %s4, %s255
      %p257 = pneg %p168
      %p258 = pneg %p165
      %p259 = scmp.lt.s32.totalorder %s17, 1
      %s260 = scalar_select %p259, %s17, 1
      %s261 = smul.addr %s260, 2
      %s262 = scalar_lea.vmem %s5, %s261
      %p263 = scmp.lt.s32.totalorder %s17, 1
      %s264 = scalar_select %p263, %s17, 1
      %s265 = smul.addr %s264, 2
      %s266 = smul.addr %s265, 4
      %s267 = scalar_lea.vmem %s0, %s266
      %p268 = scmp.lt.s32.totalorder %s17, 1
      %s269 = scalar_select %p268, %s17, 1
      %s270 = smul.addr %s269, 2
      %s271 = scalar_lea.vmem %s1, %s270
      %p272 = scmp.lt.s32.totalorder %s17, 1
      %s273 = scalar_select %p272, %s17, 1
      %s274 = smul.addr %s273, 112
      %s275 = smul.addr %s274, 4
      %s276 = scalar_lea.vmem %s2, %s275
      %p277 = scmp.lt.s32.totalorder %s17, 1
      %s278 = scalar_select %p277, %s17, 1
      %s279 = smul.addr %s278, 11
      %s280 = scalar_lea.vmem %s3, %s279
      %p281 = scmp.lt.s32.totalorder %s17, 1
      %s282 = scalar_select %p281, %s17, 1
      %s283 = smul.addr %s282, 2
      %s284 = smul.addr %s283, 8
      %s285 = scalar_lea.vmem %s4, %s284
      %p286 = scmp.lt.s32.totalorder %s17, 1
      %s287 = scalar_select %p286, %s17, 1
      %s288 = smul.addr %s287, 2
      %s289 = scalar_lea.vmem %s5, %s288
      %v291 = vlaneseq
      %v292 = vand.u32 %v291, 127
      %vm293 = vcmp.lt.s32.totalorder %v292, 32
      %v294 = vsel %vm293, 1, 0
      %v295 = vcvt.s32.f32 %v294
      %v296 = vld [vmem:[%s267] sm:$0xf]
      %v297 = vld [vmem:[%s267 + $0x4] sm:$0xf]
      %v298 = vld [vmem:[%s276] sm:$0xff]
      %v299 = vld [vmem:[%s276 + $0x8] sm:$0xf]
      %v300 = vld [vmem:[%s276 + $0x1c] sm:$0xff]
      %v301 = vld [vmem:[%s276 + $0x24] sm:$0xf]
      %v302 = vld [vmem:[%s276 + $0x38] sm:$0xff]
      %v303 = vld [vmem:[%s276 + $0x40] sm:$0xf]
      %v304 = vld [vmem:[%s276 + $0x54] sm:$0xff]
      %v305 = vld [vmem:[%s276 + $0x5c] sm:$0xf]
      %v306 = vld [vmem:[%s276 + $0x70] sm:$0xff]
      %v307 = vld [vmem:[%s276 + $0x78] sm:$0xf]
      %v308 = vld [vmem:[%s276 + $0x8c] sm:$0xff]
      %v309 = vld [vmem:[%s276 + $0x94] sm:$0xf]
      %v310 = vld [vmem:[%s276 + $0xa8] sm:$0xff]
      %v311 = vld [vmem:[%s276 + $0xb0] sm:$0xf]
      %v312 = vld [vmem:[%s276 + $0xc4] sm:$0xff]
      %v313 = vld [vmem:[%s276 + $0xcc] sm:$0xf]
      %v314 = vld [vmem:[%s276 + $0xe0] sm:$0xff]
      %v315 = vld [vmem:[%s276 + $0xe8] sm:$0xf]
      %v316 = vld [vmem:[%s276 + $0xfc] sm:$0xff]
      %v317 = vld [vmem:[%s276 + $0x104] sm:$0xf]
      %v318 = vld [vmem:[%s276 + $0x118] sm:$0xff]
      %v319 = vld [vmem:[%s276 + $0x120] sm:$0xf]
      %v320 = vld [vmem:[%s276 + $0x134] sm:$0xff]
      %v321 = vld [vmem:[%s276 + $0x13c] sm:$0xf]
      %v322 = vld [vmem:[%s276 + $0x150] sm:$0xff]
      %v323 = vld [vmem:[%s276 + $0x158] sm:$0xf]
      %v324 = vld [vmem:[%s276 + $0x16c] sm:$0xff]
      %v325 = vld [vmem:[%s276 + $0x174] sm:$0xf]
      %v326 = vld [vmem:[%s276 + $0x188] sm:$0xff]
      %v327 = vld [vmem:[%s276 + $0x190] sm:$0xf]
      %v328 = vld [vmem:[%s276 + $0x1a4] sm:$0xff]
      %v329 = vld [vmem:[%s276 + $0x1ac] sm:$0xf]
      %v330 = vld [vmem:[%s280] sm:$0x7]
      %v332 = vlaneseq
      %v333 = vshrl.u32 %v332, 7
      %v334 = vsub.s32 0, %v333
      %v335 = vrot.slane %v330, %v334
      %v336 = vlaneseq
      %v337 = vshrl.u32 %v336, 7
      %v338 = vsub.s32 1, %v337
      %v339 = vrot.slane %v330, %v338
      %v340 = vlaneseq
      %v341 = vshrl.u32 %v340, 7
      %v342 = vsub.s32 2, %v341
      %v343 = vrot.slane %v330, %v342
      %v349 = vunpack.c.l.b16 %v296
      %v350 = vunpack.c.l.b16 %v297
      %v351 = vpack.c.b16 %v350, %v349
      %v385 = vunpack.c.l.b16 %v298
      %v386 = vunpack.c.h.b16 %v298
      %v387 = vunpack.c.l.b16 %v299
      %v388 = vunpack.c.l.b16 %v300
      %v389 = vunpack.c.h.b16 %v300
      %v390 = vunpack.c.l.b16 %v301
      %v391 = vunpack.c.l.b16 %v302
      %v392 = vunpack.c.h.b16 %v302
      %v393 = vunpack.c.l.b16 %v303
      %v394 = vunpack.c.l.b16 %v304
      %v395 = vunpack.c.h.b16 %v304
      %v396 = vunpack.c.l.b16 %v305
      %v397 = vunpack.c.l.b16 %v306
      %v398 = vunpack.c.h.b16 %v306
      %v399 = vunpack.c.l.b16 %v307
      %v400 = vunpack.c.l.b16 %v308
      %v401 = vunpack.c.h.b16 %v308
      %v402 = vunpack.c.l.b16 %v309
      %v403 = vunpack.c.l.b16 %v310
      %v404 = vunpack.c.h.b16 %v310
      %v405 = vunpack.c.l.b16 %v311
      %v406 = vunpack.c.l.b16 %v312
      %v407 = vunpack.c.h.b16 %v312
      %v408 = vunpack.c.l.b16 %v313
      %v409 = vunpack.c.l.b16 %v314
      %v410 = vunpack.c.h.b16 %v314
      %v411 = vunpack.c.l.b16 %v315
      %v412 = vunpack.c.l.b16 %v316
      %v413 = vunpack.c.h.b16 %v316
      %v414 = vunpack.c.l.b16 %v317
      %v415 = vunpack.c.l.b16 %v318
      %v416 = vunpack.c.h.b16 %v318
      %v417 = vunpack.c.l.b16 %v319
      %v418 = vunpack.c.l.b16 %v320
      %v419 = vunpack.c.h.b16 %v320
      %v420 = vunpack.c.l.b16 %v321
      %v421 = vunpack.c.l.b16 %v322
      %v422 = vunpack.c.h.b16 %v322
      %v423 = vunpack.c.l.b16 %v323
      %v424 = vunpack.c.l.b16 %v324
      %v425 = vunpack.c.h.b16 %v324
      %v426 = vunpack.c.l.b16 %v325
      %v427 = vunpack.c.l.b16 %v326
      %v428 = vunpack.c.h.b16 %v326
      %v429 = vunpack.c.l.b16 %v327
      %v430 = vunpack.c.l.b16 %v328
      %v431 = vunpack.c.h.b16 %v328
      %v432 = vunpack.c.l.b16 %v329
      %v433 = vpack.c.b16 %v388, %v385
      %v434 = vpack.c.b16 %v389, %v386
      %v435 = vpack.c.b16 %v390, %v387
      %v436 = vpack.c.b16 %v394, %v391
      %v437 = vpack.c.b16 %v395, %v392
      %v438 = vpack.c.b16 %v396, %v393
      %v439 = vpack.c.b16 %v400, %v397
      %v440 = vpack.c.b16 %v401, %v398
      %v441 = vpack.c.b16 %v402, %v399
      %v442 = vpack.c.b16 %v406, %v403
      %v443 = vpack.c.b16 %v407, %v404
      %v444 = vpack.c.b16 %v408, %v405
      %v445 = vpack.c.b16 %v412, %v409
      %v446 = vpack.c.b16 %v413, %v410
      %v447 = vpack.c.b16 %v414, %v411
      %v448 = vpack.c.b16 %v418, %v415
      %v449 = vpack.c.b16 %v419, %v416
      %v450 = vpack.c.b16 %v420, %v417
      %v451 = vpack.c.b16 %v424, %v421
      %v452 = vpack.c.b16 %v425, %v422
      %v453 = vpack.c.b16 %v426, %v423
      %v454 = vpack.c.b16 %v430, %v427
      %v455 = vpack.c.b16 %v431, %v428
      %v456 = vpack.c.b16 %v432, %v429
      %481 = vmatprep.subr.bf16.mxu0 %v434
      %482 = vmatpush1.bf16.msra.mxu0 %v433
      %483 = vmatprep.subr.bf16.mxu0 %v437
      %484 = vmatpush1.bf16.msra.mxu0 %v436
      %485 = vmatprep.subr.bf16.mxu0 %v440
      %486 = vmatpush1.bf16.msra.mxu0 %v439
      %487 = vmatprep.subr.bf16.mxu0 %v443
      %488 = vmatpush1.bf16.msra.mxu0 %v442
      %489 = vmatprep.subr.bf16.mxu0 %v446
      %490 = vmatpush1.bf16.msra.mxu0 %v445
      %491 = vmatprep.subr.bf16.mxu0 %v449
      %492 = vmatpush1.bf16.msra.mxu0 %v448
      %493 = vmatprep.subr.bf16.mxu0 %v452
      %494 = vmatpush1.bf16.msra.mxu0 %v451
      %495 = vmatprep.subr.bf16.mxu0 %v455
      %496 = vmatpush1.bf16.msra.mxu0 %v454
      %497 = vmatprep.subr.bf16.mxu0 0
      %498 = vmatpush1.bf16.msra.mxu0 0
      %499 = vmatprep.subr.bf16.mxu0 0
      %500 = vmatpush1.bf16.msra.mxu0 0
      %501 = vmatprep.subr.bf16.mxu0 0
      %502 = vmatpush1.bf16.msra.mxu0 0
      %503 = vmatprep.subr.bf16.mxu0 0
      %504 = vmatpush1.bf16.msra.mxu0 0
      %505 = vmatprep.subr.bf16.mxu0 0
      %506 = vmatpush1.bf16.msra.mxu0 0
      %507 = vmatprep.subr.bf16.mxu0 0
      %508 = vmatpush1.bf16.msra.mxu0 0
      %509 = vmatprep.subr.bf16.mxu0 0
      %510 = vmatpush1.bf16.msra.mxu0 0
      %511 = vmatprep.subr.bf16.mxu0 0
      %512 = vmatpush1.bf16.msra.mxu0 0
      %513 = vmatprep.mubr.bf16.mxu0 0
      %514 = vmatmul.mubr.bf16.gmra.mrb[0].mxu0 %v351
      %v515 = vpop.f32.mrb[0].mxu0
      %v516 = vadd.f32 %v335, %v515
      %v517 = vpop.f32.mrb[0].mxu0
      %v518 = vadd.f32 %v339, %v517
      %v519 = vpop.f32.mrb[0].mxu0
      %v520 = vadd.f32 %v335, %v519
      %v521 = vpop.f32.mrb[0].mxu0
      %v522 = vadd.f32 %v339, %v521
      %523 = vdwg.mxu0
      %524 = vmatprep.subr.bf16.mxu0 0
      %525 = vmatpush1.bf16.msra.mxu0 %v435
      %526 = vmatprep.subr.bf16.mxu0 0
      %527 = vmatpush1.bf16.msra.mxu0 %v438
      %528 = vmatprep.subr.bf16.mxu0 0
      %529 = vmatpush1.bf16.msra.mxu0 %v441
      %530 = vmatprep.subr.bf16.mxu0 0
      %531 = vmatpush1.bf16.msra.mxu0 %v444
      %532 = vmatprep.subr.bf16.mxu0 0
      %533 = vmatpush1.bf16.msra.mxu0 %v447
      %534 = vmatprep.subr.bf16.mxu0 0
      %535 = vmatpush1.bf16.msra.mxu0 %v450
      %536 = vmatprep.subr.bf16.mxu0 0
      %537 = vmatpush1.bf16.msra.mxu0 %v453
      %538 = vmatprep.subr.bf16.mxu0 0
      %539 = vmatpush1.bf16.msra.mxu0 %v456
      %540 = vmatprep.subr.bf16.mxu0 0
      %541 = vmatpush1.bf16.msra.mxu0 0
      %542 = vmatprep.subr.bf16.mxu0 0
      %543 = vmatpush1.bf16.msra.mxu0 0
      %544 = vmatprep.subr.bf16.mxu0 0
      %545 = vmatpush1.bf16.msra.mxu0 0
      %546 = vmatprep.subr.bf16.mxu0 0
      %547 = vmatpush1.bf16.msra.mxu0 0
      %548 = vmatprep.subr.bf16.mxu0 0
      %549 = vmatpush1.bf16.msra.mxu0 0
      %550 = vmatprep.subr.bf16.mxu0 0
      %551 = vmatpush1.bf16.msra.mxu0 0
      %552 = vmatprep.subr.bf16.mxu0 0
      %553 = vmatpush1.bf16.msra.mxu0 0
      %554 = vmatprep.subr.bf16.mxu0 0
      %555 = vmatpush1.bf16.msra.mxu0 0
      %556 = vmatprep.mubr.bf16.mxu0 0
      %557 = vmatmul.mubr.bf16.gmra.mrb[0].mxu0 %v351
      %v558 = vpop.f32.mrb[0].mxu0
      %v559 = vadd.f32 %v343, %v558
      %v560 = vpop.f32.mrb[0].mxu0
      %v561 = vpop.f32.mrb[0].mxu0
      %v562 = vadd.f32 %v343, %v561
      %v563 = vpop.f32.mrb[0].mxu0
      %564 = vdwg.mxu0
      %v565 = vpack.c.bf16 %v516, %v516
      %v566 = vpack.c.bf16 %v520, %v520
      %v567 = vpack.c.bf16 %v518, %v518
      %v568 = vpack.c.bf16 %v522, %v522
      %v569 = vpack.c.bf16 %v559, %v559
      %v570 = vpack.c.bf16 %v562, %v562
      %v571 = vld [vmem:[%s271] sm:$0x3]
      %vm572 = vcmp.gt.s32.totalorder %v571, 0
      %v573 = vsel %vm572, 0.0, -1e+30
      %v576 = vunpack.c.l.s4 1966171168
      %v577 = vunpack.c.0.s8 %v576
      %v578 = vlaneseq
      %v579 = vshrl.u32 %v578, 7
      %v580 = vsub.s32 %v577, %v579
      %v581 = vrot.slane %v573, %v580
      %v582 = vcombine.high %v581, %v581
      %v584 = vunpack.c.l.s4 1966171168
      %v585 = vunpack.c.0.s8 %v584
      %v586 = vlaneseq
      %v587 = vshrl.u32 %v586, 7
      %v588 = vsub.s32 %v585, %v587
      %v589 = vrot.slane %v581, %v588
      %v591 = vunpack.c.l.s4 1966171168
      %v592 = vunpack.c.0.s8 %v591
      %v593 = vlaneseq
      %v594 = vshrl.u32 %v593, 7
      %v595 = vsub.s32 %v592, %v594
      %v596 = vrot.slane %v582, %v595
      %v597 = vlaneseq
      %v598 = vshrl.u32 %v597, 7
      %v599 = vsub.s32 0, %v598
      %v600 = vrot.slane %v589, %v599
      %v601 = vlaneseq
      %v602 = vshrl.u32 %v601, 7
      %v603 = vsub.s32 0, %v602
      %v604 = vrot.slane %v596, %v603
      %607 = vmatprep.subr.bf16.mxu0 0
      %608 = vmatpush1.bf16.xpose.msra.mxu0 %v567
      %609 = vmatprep.subr.bf16.mxu0 0
      %610 = vmatpush1.bf16.xpose.msra.mxu0 0
      %611 = vmatprep.subr.bf16.mxu0 0
      %612 = vmatpush1.bf16.xpose.msra.mxu0 0
      %613 = vmatprep.subr.bf16.mxu0 0
      %614 = vmatpush1.bf16.xpose.msra.mxu0 0
      %615 = vmatprep.subr.bf16.mxu0 0
      %616 = vmatpush1.bf16.xpose.msra.mxu0 0
      %617 = vmatprep.subr.bf16.mxu0 0
      %618 = vmatpush1.bf16.xpose.msra.mxu0 0
      %619 = vmatprep.subr.bf16.mxu0 0
      %620 = vmatpush1.bf16.xpose.msra.mxu0 0
      %621 = vmatprep.subr.bf16.mxu0 0
      %622 = vmatpush1.bf16.xpose.msra.mxu0 0
      %623 = vmatprep.subr.bf16.mxu0 0
      %624 = vmatpush1.bf16.xpose.msra.mxu0 0
      %625 = vmatprep.subr.bf16.mxu0 0
      %626 = vmatpush1.bf16.xpose.msra.mxu0 0
      %627 = vmatprep.subr.bf16.mxu0 0
      %628 = vmatpush1.bf16.xpose.msra.mxu0 0
      %629 = vmatprep.subr.bf16.mxu0 0
      %630 = vmatpush1.bf16.xpose.msra.mxu0 0
      %631 = vmatprep.subr.bf16.mxu0 0
      %632 = vmatpush1.bf16.xpose.msra.mxu0 0
      %633 = vmatprep.subr.bf16.mxu0 0
      %634 = vmatpush1.bf16.xpose.msra.mxu0 0
      %635 = vmatprep.subr.bf16.mxu0 0
      %636 = vmatpush1.bf16.xpose.msra.mxu0 0
      %637 = vmatprep.subr.bf16.mxu0 0
      %638 = vmatpush1.bf16.xpose.msra.mxu0 0
      %639 = vmatprep.mubr.bf16.mxu0 0
      %640 = vmatmul.mubr.bf16.gmra.mrb[0].mxu0 %v565
      %v641 = vpop.f32.mrb[0].mxu0
      %v642 = vadd.f32 %v600, %v641
      %v643 = vpop.f32.mrb[0].mxu0
      %v644 = vpop.f32.mrb[0].mxu0
      %v645 = vpop.f32.mrb[0].mxu0
      %646 = vdwg.mxu0
      %647 = vmatprep.subr.bf16.mxu0 0
      %648 = vmatpush1.bf16.xpose.msra.mxu0 %v568
      %649 = vmatprep.subr.bf16.mxu0 0
      %650 = vmatpush1.bf16.xpose.msra.mxu0 0
      %651 = vmatprep.subr.bf16.mxu0 0
      %652 = vmatpush1.bf16.xpose.msra.mxu0 0
      %653 = vmatprep.subr.bf16.mxu0 0
      %654 = vmatpush1.bf16.xpose.msra.mxu0 0
      %655 = vmatprep.subr.bf16.mxu0 0
      %656 = vmatpush1.bf16.xpose.msra.mxu0 0
      %657 = vmatprep.subr.bf16.mxu0 0
      %658 = vmatpush1.bf16.xpose.msra.mxu0 0
      %659 = vmatprep.subr.bf16.mxu0 0
      %660 = vmatpush1.bf16.xpose.msra.mxu0 0
      %661 = vmatprep.subr.bf16.mxu0 0
      %662 = vmatpush1.bf16.xpose.msra.mxu0 0
      %663 = vmatprep.subr.bf16.mxu0 0
      %664 = vmatpush1.bf16.xpose.msra.mxu0 0
      %665 = vmatprep.subr.bf16.mxu0 0
      %666 = vmatpush1.bf16.xpose.msra.mxu0 0
      %667 = vmatprep.subr.bf16.mxu0 0
      %668 = vmatpush1.bf16.xpose.msra.mxu0 0
      %669 = vmatprep.subr.bf16.mxu0 0
      %670 = vmatpush1.bf16.xpose.msra.mxu0 0
      %671 = vmatprep.subr.bf16.mxu0 0
      %672 = vmatpush1.bf16.xpose.msra.mxu0 0
      %673 = vmatprep.subr.bf16.mxu0 0
      %674 = vmatpush1.bf16.xpose.msra.mxu0 0
      %675 = vmatprep.subr.bf16.mxu0 0
      %676 = vmatpush1.bf16.xpose.msra.mxu0 0
      %677 = vmatprep.subr.bf16.mxu0 0
      %678 = vmatpush1.bf16.xpose.msra.mxu0 0
      %679 = vmatprep.mubr.bf16.mxu0 0
      %680 = vmatmul.mubr.bf16.gmra.mrb[0].mxu0 %v566
      %v681 = vpop.f32.mrb[0].mxu0
      %v682 = vadd.f32 %v604, %v681
      %v683 = vpop.f32.mrb[0].mxu0
      %v684 = vpop.f32.mrb[0].mxu0
      %v685 = vpop.f32.mrb[0].mxu0
      %686 = vdwg.mxu0
      %vm687 = vcmask 64512
      %v688 = vsel %vm687, %v642, -inf
      %689 = vmax.xlane.f32.xlu0 %v688
      %v690 = vpop.xlane.xlu0 %689
      %v691 = vsel %vm687, %v682, -inf
      %692 = vmax.xlane.f32.xlu0 %v691
      %v693 = vpop.xlane.xlu0 %692
      %v694 = vsub.f32 %v642, %v690
      %v695 = vsub.f32 %v682, %v693
      %v696 = vmul.f32 %v694, 1.442695
      %v697 = vpow.pop %v696
      %v698 = vmul.f32 %v695, 1.442695
      %v699 = vpow.pop %v698
      %v700 = vsel %vm687, %v697, 0.0
      %701 = vadd.xlane.f32.xlu0 %v700
      %v702 = vpop.xlane.xlu0 %701
      %v703 = vsel %vm687, %v699, 0.0
      %704 = vadd.xlane.f32.xlu0 %v703
      %v705 = vpop.xlane.xlu0 %704
      %v706 = vrcp.pop %v702
      %v707 = vrcp.pop %v705
      %v708 = vmul.f32 %v697, %v706
      %v709 = vmul.f32 %v699, %v707
      %v710 = vpack.c.bf16 %v708, %v708
      %v711 = vpack.c.bf16 %v709, %v709
      %v713 = vsel %vm687, %v710, 0
      %vm715 = vcmask 1043456
      %v717 = vsel %vm715, %v569, 0
      %719 = vmatprep.subr.bf16.mxu0 0
      %720 = vmatpush1.bf16.msra.mxu0 %v717
      %721 = vmatprep.subr.bf16.mxu0 0
      %722 = vmatpush1.bf16.msra.mxu0 0
      %723 = vmatprep.subr.bf16.mxu0 0
      %724 = vmatpush1.bf16.msra.mxu0 0
      %725 = vmatprep.subr.bf16.mxu0 0
      %726 = vmatpush1.bf16.msra.mxu0 0
      %727 = vmatprep.subr.bf16.mxu0 0
      %728 = vmatpush1.bf16.msra.mxu0 0
      %729 = vmatprep.subr.bf16.mxu0 0
      %730 = vmatpush1.bf16.msra.mxu0 0
      %731 = vmatprep.subr.bf16.mxu0 0
      %732 = vmatpush1.bf16.msra.mxu0 0
      %733 = vmatprep.subr.bf16.mxu0 0
      %734 = vmatpush1.bf16.msra.mxu0 0
      %735 = vmatprep.subr.bf16.mxu0 0
      %736 = vmatpush1.bf16.msra.mxu0 0
      %737 = vmatprep.subr.bf16.mxu0 0
      %738 = vmatpush1.bf16.msra.mxu0 0
      %739 = vmatprep.subr.bf16.mxu0 0
      %740 = vmatpush1.bf16.msra.mxu0 0
      %741 = vmatprep.subr.bf16.mxu0 0
      %742 = vmatpush1.bf16.msra.mxu0 0
      %743 = vmatprep.subr.bf16.mxu0 0
      %744 = vmatpush1.bf16.msra.mxu0 0
      %745 = vmatprep.subr.bf16.mxu0 0
      %746 = vmatpush1.bf16.msra.mxu0 0
      %747 = vmatprep.subr.bf16.mxu0 0
      %748 = vmatpush1.bf16.msra.mxu0 0
      %749 = vmatprep.subr.bf16.mxu0 0
      %750 = vmatpush1.bf16.msra.mxu0 0
      %751 = vmatprep.mubr.bf16.mxu0 0
      %752 = vmatmul.mubr.bf16.gmra.mrb[0].mxu0 %v713
      %v753 = vpop.f32.mrb[0].mxu0
      %v754 = vadd.f32 0.0, %v753
      %v755 = vpop.f32.mrb[0].mxu0
      %v756 = vpop.f32.mrb[0].mxu0
      %v757 = vpop.f32.mrb[0].mxu0
      %758 = vdwg.mxu0
      %v760 = vsel %vm687, %v711, 0
      %v763 = vsel %vm715, %v570, 0
      %765 = vmatprep.subr.bf16.mxu0 0
      %766 = vmatpush1.bf16.msra.mxu0 %v763
      %767 = vmatprep.subr.bf16.mxu0 0
      %768 = vmatpush1.bf16.msra.mxu0 0
      %769 = vmatprep.subr.bf16.mxu0 0
      %770 = vmatpush1.bf16.msra.mxu0 0
      %771 = vmatprep.subr.bf16.mxu0 0
      %772 = vmatpush1.bf16.msra.mxu0 0
      %773 = vmatprep.subr.bf16.mxu0 0
      %774 = vmatpush1.bf16.msra.mxu0 0
      %775 = vmatprep.subr.bf16.mxu0 0
      %776 = vmatpush1.bf16.msra.mxu0 0
      %777 = vmatprep.subr.bf16.mxu0 0
      %778 = vmatpush1.bf16.msra.mxu0 0
      %779 = vmatprep.subr.bf16.mxu0 0
      %780 = vmatpush1.bf16.msra.mxu0 0
      %781 = vmatprep.subr.bf16.mxu0 0
      %782 = vmatpush1.bf16.msra.mxu0 0
      %783 = vmatprep.subr.bf16.mxu0 0
      %784 = vmatpush1.bf16.msra.mxu0 0
      %785 = vmatprep.subr.bf16.mxu0 0
      %786 = vmatpush1.bf16.msra.mxu0 0
      %787 = vmatprep.subr.bf16.mxu0 0
      %788 = vmatpush1.bf16.msra.mxu0 0
      %789 = vmatprep.subr.bf16.mxu0 0
      %790 = vmatpush1.bf16.msra.mxu0 0
      %791 = vmatprep.subr.bf16.mxu0 0
      %792 = vmatpush1.bf16.msra.mxu0 0
      %793 = vmatprep.subr.bf16.mxu0 0
      %794 = vmatpush1.bf16.msra.mxu0 0
      %795 = vmatprep.subr.bf16.mxu0 0
      %796 = vmatpush1.bf16.msra.mxu0 0
      %797 = vmatprep.mubr.bf16.mxu0 0
      %798 = vmatmul.mubr.bf16.gmra.mrb[0].mxu0 %v760
      %v799 = vpop.f32.mrb[0].mxu0
      %v800 = vadd.f32 0.0, %v799
      %v801 = vpop.f32.mrb[0].mxu0
      %v802 = vpop.f32.mrb[0].mxu0
      %v803 = vpop.f32.mrb[0].mxu0
      %804 = vdwg.mxu0
      %v805 = vpack.c.bf16 %v800, %v754
      %v806 = vld [vmem:[%s276 + $0xc] sm:$0xf]
      %v807 = vld [vmem:[%s276 + $0x28] sm:$0xf]
      %v808 = vld [vmem:[%s276 + $0x44] sm:$0xf]
      %v809 = vld [vmem:[%s276 + $0x60] sm:$0xf]
      %v810 = vld [vmem:[%s276 + $0x7c] sm:$0xf]
      %v811 = vld [vmem:[%s276 + $0x98] sm:$0xf]
      %v812 = vld [vmem:[%s276 + $0xb4] sm:$0xf]
      %v813 = vld [vmem:[%s276 + $0xd0] sm:$0xf]
      %v814 = vld [vmem:[%s276 + $0xec] sm:$0xf]
      %v815 = vld [vmem:[%s276 + $0x108] sm:$0xf]
      %v816 = vld [vmem:[%s276 + $0x124] sm:$0xf]
      %v817 = vld [vmem:[%s276 + $0x140] sm:$0xf]
      %v818 = vld [vmem:[%s276 + $0x15c] sm:$0xf]
      %v819 = vld [vmem:[%s276 + $0x178] sm:$0xf]
      %v820 = vld [vmem:[%s276 + $0x194] sm:$0xf]
      %v821 = vld [vmem:[%s276 + $0x1b0] sm:$0xf]
      %v822 = vld [vmem:[%s280 + $0x3] sm:$0x1]
      %v824 = vlaneseq
      %v825 = vshrl.u32 %v824, 7
      %v826 = vsub.s32 0, %v825
      %v827 = vrot.slane %v822, %v826
      %v845 = vunpack.c.l.b16 %v806
      %v846 = vunpack.c.l.b16 %v807
      %v847 = vunpack.c.l.b16 %v808
      %v848 = vunpack.c.l.b16 %v809
      %v849 = vunpack.c.l.b16 %v810
      %v850 = vunpack.c.l.b16 %v811
      %v851 = vunpack.c.l.b16 %v812
      %v852 = vunpack.c.l.b16 %v813
      %v853 = vunpack.c.l.b16 %v814
      %v854 = vunpack.c.l.b16 %v815
      %v855 = vunpack.c.l.b16 %v816
      %v856 = vunpack.c.l.b16 %v817
      %v857 = vunpack.c.l.b16 %v818
      %v858 = vunpack.c.l.b16 %v819
      %v859 = vunpack.c.l.b16 %v820
      %v860 = vunpack.c.l.b16 %v821
      %v861 = vpack.c.b16 %v846, %v845
      %v862 = vpack.c.b16 %v848, %v847
      %v863 = vpack.c.b16 %v850, %v849
      %v864 = vpack.c.b16 %v852, %v851
      %v865 = vpack.c.b16 %v854, %v853
      %v866 = vpack.c.b16 %v856, %v855
      %v867 = vpack.c.b16 %v858, %v857
      %v868 = vpack.c.b16 %v860, %v859
      %877 = vmatprep.subr.bf16.mxu0 0
      %878 = vmatpush1.bf16.msra.mxu0 %v861
      %879 = vmatprep.subr.bf16.mxu0 0
      %880 = vmatpush1.bf16.msra.mxu0 %v862
      %881 = vmatprep.subr.bf16.mxu0 0
      %882 = vmatpush1.bf16.msra.mxu0 %v863
      %883 = vmatprep.subr.bf16.mxu0 0
      %884 = vmatpush1.bf16.msra.mxu0 %v864
      %885 = vmatprep.subr.bf16.mxu0 0
      %886 = vmatpush1.bf16.msra.mxu0 %v865
      %887 = vmatprep.subr.bf16.mxu0 0
      %888 = vmatpush1.bf16.msra.mxu0 %v866
      %889 = vmatprep.subr.bf16.mxu0 0
      %890 = vmatpush1.bf16.msra.mxu0 %v867
      %891 = vmatprep.subr.bf16.mxu0 0
      %892 = vmatpush1.bf16.msra.mxu0 %v868
      %893 = vmatprep.subr.bf16.mxu0 0
      %894 = vmatpush1.bf16.msra.mxu0 0
      %895 = vmatprep.subr.bf16.mxu0 0
      %896 = vmatpush1.bf16.msra.mxu0 0
      %897 = vmatprep.subr.bf16.mxu0 0
      %898 = vmatpush1.bf16.msra.mxu0 0
      %899 = vmatprep.subr.bf16.mxu0 0
      %900 = vmatpush1.bf16.msra.mxu0 0
      %901 = vmatprep.subr.bf16.mxu0 0
      %902 = vmatpush1.bf16.msra.mxu0 0
      %903 = vmatprep.subr.bf16.mxu0 0
      %904 = vmatpush1.bf16.msra.mxu0 0
      %905 = vmatprep.subr.bf16.mxu0 0
      %906 = vmatpush1.bf16.msra.mxu0 0
      %907 = vmatprep.subr.bf16.mxu0 0
      %908 = vmatpush1.bf16.msra.mxu0 0
      %909 = vmatprep.mubr.bf16.mxu0 0
      %910 = vmatmul.mubr.bf16.gmra.mrb[0].mxu0 %v805
      %v911 = vpop.f32.mrb[0].mxu0
      %v912 = vadd.f32 %v827, %v911
      %v913 = vpop.f32.mrb[0].mxu0
      %v914 = vpop.f32.mrb[0].mxu0
      %v915 = vadd.f32 %v827, %v914
      %v916 = vpop.f32.mrb[0].mxu0
      %917 = vdwg.mxu0
      %v918 = vunpack.c.l.bf16 %v296
      %v919 = vunpack.c.l.bf16 %v297
      %v920 = vadd.f32 %v918, %v912
      %v921 = vadd.f32 %v919, %v915
      %v922 = vld [vmem:[%s280 + $0x4] sm:$0x1]
      %v923 = vld [vmem:[%s280 + $0x5] sm:$0x1]
      %924 = vadd.xlane.f32.xlu0 %v920
      %v925 = vpop.xlane.xlu0 %924
      %926 = vadd.xlane.f32.xlu0 %v921
      %v927 = vpop.xlane.xlu0 %926
      %v928 = vmul.f32 %v925, 0.03125
      %v929 = vmul.f32 %v927, 0.03125
      %v930 = vsub.f32 %v920, %v928
      %v931 = vsub.f32 %v921, %v929
      %v932 = vmul.f32 %v930, %v295
      %v933 = vmul.f32 %v931, %v295
      %v934 = vmul.f32 %v932, %v932
      %v935 = vmul.f32 %v933, %v933
      %936 = vadd.xlane.f32.xlu0 %v934
      %v937 = vpop.xlane.xlu0 %936
      %938 = vadd.xlane.f32.xlu0 %v935
      %v939 = vpop.xlane.xlu0 %938
      %v940 = vmul.f32 %v937, 0.03125
      %v941 = vmul.f32 %v939, 0.03125
      %v942 = vadd.f32 %v940, 1e-12
      %v943 = vadd.f32 %v941, 1e-12
      %v944 = vrsqrt.pop %v942
      %v945 = vrsqrt.pop %v943
      %v946 = vmul.f32 %v932, %v944
      %v947 = vmul.f32 %v933, %v945
      %v949 = vlaneseq
      %v950 = vshrl.u32 %v949, 7
      %v951 = vsub.s32 0, %v950
      %v952 = vrot.slane %v922, %v951
      %v954 = vmul.f32 %v946, %v952
      %v955 = vmul.f32 %v947, %v952
      %v957 = vlaneseq
      %v958 = vshrl.u32 %v957, 7
      %v959 = vsub.s32 0, %v958
      %v960 = vrot.slane %v923, %v959
      %v962 = vadd.f32 %v954, %v960
      %v963 = vadd.f32 %v955, %v960
      %v964 = vpack.c.bf16 %v963, %v962
      %v965 = vld [vmem:[%s276 + $0x10] sm:$0xf]
      %v966 = vld [vmem:[%s276 + $0x2c] sm:$0xf]
      %v967 = vld [vmem:[%s276 + $0x48] sm:$0xf]
      %v968 = vld [vmem:[%s276 + $0x64] sm:$0xf]
      %v969 = vld [vmem:[%s276 + $0x80] sm:$0xf]
      %v970 = vld [vmem:[%s276 + $0x9c] sm:$0xf]
      %v971 = vld [vmem:[%s276 + $0xb8] sm:$0xf]
      %v972 = vld [vmem:[%s276 + $0xd4] sm:$0xf]
      %v973 = vld [vmem:[%s276 + $0xf0] sm:$0xf]
      %v974 = vld [vmem:[%s276 + $0x10c] sm:$0xf]
      %v975 = vld [vmem:[%s276 + $0x128] sm:$0xf]
      %v976 = vld [vmem:[%s276 + $0x144] sm:$0xf]
      %v977 = vld [vmem:[%s276 + $0x160] sm:$0xf]
      %v978 = vld [vmem:[%s276 + $0x17c] sm:$0xf]
      %v979 = vld [vmem:[%s276 + $0x198] sm:$0xf]
      %v980 = vld [vmem:[%s276 + $0x1b4] sm:$0xf]
      %v981 = vld [vmem:[%s280 + $0x6] sm:$0x1]
      %v983 = vlaneseq
      %v984 = vshrl.u32 %v983, 7
      %v985 = vsub.s32 0, %v984
      %v986 = vrot.slane %v981, %v985
      %v1004 = vunpack.c.l.b16 %v965
      %v1005 = vunpack.c.l.b16 %v966
      %v1006 = vunpack.c.l.b16 %v967
      %v1007 = vunpack.c.l.b16 %v968
      %v1008 = vunpack.c.l.b16 %v969
      %v1009 = vunpack.c.l.b16 %v970
      %v1010 = vunpack.c.l.b16 %v971
      %v1011 = vunpack.c.l.b16 %v972
      %v1012 = vunpack.c.l.b16 %v973
      %v1013 = vunpack.c.l.b16 %v974
      %v1014 = vunpack.c.l.b16 %v975
      %v1015 = vunpack.c.l.b16 %v976
      %v1016 = vunpack.c.l.b16 %v977
      %v1017 = vunpack.c.l.b16 %v978
      %v1018 = vunpack.c.l.b16 %v979
      %v1019 = vunpack.c.l.b16 %v980
      %v1020 = vpack.c.b16 %v1005, %v1004
      %v1021 = vpack.c.b16 %v1007, %v1006
      %v1022 = vpack.c.b16 %v1009, %v1008
      %v1023 = vpack.c.b16 %v1011, %v1010
      %v1024 = vpack.c.b16 %v1013, %v1012
      %v1025 = vpack.c.b16 %v1015, %v1014
      %v1026 = vpack.c.b16 %v1017, %v1016
      %v1027 = vpack.c.b16 %v1019, %v1018
      %1036 = vmatprep.subr.bf16.mxu0 0
      %1037 = vmatpush1.bf16.msra.mxu0 %v1020
      %1038 = vmatprep.subr.bf16.mxu0 0
      %1039 = vmatpush1.bf16.msra.mxu0 %v1021
      %1040 = vmatprep.subr.bf16.mxu0 0
      %1041 = vmatpush1.bf16.msra.mxu0 %v1022
      %1042 = vmatprep.subr.bf16.mxu0 0
      %1043 = vmatpush1.bf16.msra.mxu0 %v1023
      %1044 = vmatprep.subr.bf16.mxu0 0
      %1045 = vmatpush1.bf16.msra.mxu0 %v1024
      %1046 = vmatprep.subr.bf16.mxu0 0
      %1047 = vmatpush1.bf16.msra.mxu0 %v1025
      %1048 = vmatprep.subr.bf16.mxu0 0
      %1049 = vmatpush1.bf16.msra.mxu0 %v1026
      %1050 = vmatprep.subr.bf16.mxu0 0
      %1051 = vmatpush1.bf16.msra.mxu0 %v1027
      %1052 = vmatprep.subr.bf16.mxu0 0
      %1053 = vmatpush1.bf16.msra.mxu0 0
      %1054 = vmatprep.subr.bf16.mxu0 0
      %1055 = vmatpush1.bf16.msra.mxu0 0
      %1056 = vmatprep.subr.bf16.mxu0 0
      %1057 = vmatpush1.bf16.msra.mxu0 0
      %1058 = vmatprep.subr.bf16.mxu0 0
      %1059 = vmatpush1.bf16.msra.mxu0 0
      %1060 = vmatprep.subr.bf16.mxu0 0
      %1061 = vmatpush1.bf16.msra.mxu0 0
      %1062 = vmatprep.subr.bf16.mxu0 0
      %1063 = vmatpush1.bf16.msra.mxu0 0
      %1064 = vmatprep.subr.bf16.mxu0 0
      %1065 = vmatpush1.bf16.msra.mxu0 0
      %1066 = vmatprep.subr.bf16.mxu0 0
      %1067 = vmatpush1.bf16.msra.mxu0 0
      %1068 = vmatprep.mubr.bf16.mxu0 0
      %1069 = vmatmul.mubr.bf16.gmra.mrb[0].mxu0 %v964
      %v1070 = vpop.f32.mrb[0].mxu0
      %v1071 = vadd.f32 %v986, %v1070
      %v1072 = vpop.f32.mrb[0].mxu0
      %v1073 = vpop.f32.mrb[0].mxu0
      %v1074 = vadd.f32 %v986, %v1073
      %v1075 = vpop.f32.mrb[0].mxu0
      %1076 = vdwg.mxu0
      %v1077 = vmul.f32 %v1071, 0.5
      %v1078 = vmul.f32 %v1074, 0.5
      %v1079 = vmul.f32 %v1071, 0.044715
      %v1080 = vmul.f32 %v1074, 0.044715
      %v1081 = vmul.f32 %v1079, %v1071
      %v1082 = vmul.f32 %v1080, %v1074
      %v1083 = vmul.f32 %v1081, %v1071
      %v1084 = vmul.f32 %v1082, %v1074
      %v1085 = vadd.f32 %v1071, %v1083
      %v1086 = vadd.f32 %v1074, %v1084
      %v1087 = vmul.f32 %v1085, 0.7978846
      %v1088 = vmul.f32 %v1086, 0.7978846
      %v1089 = vtanh.pop %v1087
      %v1090 = vtanh.pop %v1088
      %v1091 = vadd.f32 %v1089, 1.0
      %v1092 = vadd.f32 %v1090, 1.0
      %v1093 = vmul.f32 %v1077, %v1091
      %v1094 = vmul.f32 %v1078, %v1092
      %v1095 = vpack.c.bf16 %v1094, %v1093
      %v1096 = vld [vmem:[%s276 + $0x14] sm:$0xf]
      %v1097 = vld [vmem:[%s276 + $0x30] sm:$0xf]
      %v1098 = vld [vmem:[%s276 + $0x4c] sm:$0xf]
      %v1099 = vld [vmem:[%s276 + $0x68] sm:$0xf]
      %v1100 = vld [vmem:[%s276 + $0x84] sm:$0xf]
      %v1101 = vld [vmem:[%s276 + $0xa0] sm:$0xf]
      %v1102 = vld [vmem:[%s276 + $0xbc] sm:$0xf]
      %v1103 = vld [vmem:[%s276 + $0xd8] sm:$0xf]
      %v1104 = vld [vmem:[%s276 + $0xf4] sm:$0xf]
      %v1105 = vld [vmem:[%s276 + $0x110] sm:$0xf]
      %v1106 = vld [vmem:[%s276 + $0x12c] sm:$0xf]
      %v1107 = vld [vmem:[%s276 + $0x148] sm:$0xf]
      %v1108 = vld [vmem:[%s276 + $0x164] sm:$0xf]
      %v1109 = vld [vmem:[%s276 + $0x180] sm:$0xf]
      %v1110 = vld [vmem:[%s276 + $0x19c] sm:$0xf]
      %v1111 = vld [vmem:[%s276 + $0x1b8] sm:$0xf]
      %v1112 = vld [vmem:[%s280 + $0x7] sm:$0x1]
      %v1114 = vlaneseq
      %v1115 = vshrl.u32 %v1114, 7
      %v1116 = vsub.s32 0, %v1115
      %v1117 = vrot.slane %v1112, %v1116
      %v1135 = vunpack.c.l.b16 %v1096
      %v1136 = vunpack.c.l.b16 %v1097
      %v1137 = vunpack.c.l.b16 %v1098
      %v1138 = vunpack.c.l.b16 %v1099
      %v1139 = vunpack.c.l.b16 %v1100
      %v1140 = vunpack.c.l.b16 %v1101
      %v1141 = vunpack.c.l.b16 %v1102
      %v1142 = vunpack.c.l.b16 %v1103
      %v1143 = vunpack.c.l.b16 %v1104
      %v1144 = vunpack.c.l.b16 %v1105
      %v1145 = vunpack.c.l.b16 %v1106
      %v1146 = vunpack.c.l.b16 %v1107
      %v1147 = vunpack.c.l.b16 %v1108
      %v1148 = vunpack.c.l.b16 %v1109
      %v1149 = vunpack.c.l.b16 %v1110
      %v1150 = vunpack.c.l.b16 %v1111
      %v1151 = vpack.c.b16 %v1136, %v1135
      %v1152 = vpack.c.b16 %v1138, %v1137
      %v1153 = vpack.c.b16 %v1140, %v1139
      %v1154 = vpack.c.b16 %v1142, %v1141
      %v1155 = vpack.c.b16 %v1144, %v1143
      %v1156 = vpack.c.b16 %v1146, %v1145
      %v1157 = vpack.c.b16 %v1148, %v1147
      %v1158 = vpack.c.b16 %v1150, %v1149
      %1167 = vmatprep.subr.bf16.mxu0 0
      %1168 = vmatpush1.bf16.msra.mxu0 %v1151
      %1169 = vmatprep.subr.bf16.mxu0 0
      %1170 = vmatpush1.bf16.msra.mxu0 %v1152
      %1171 = vmatprep.subr.bf16.mxu0 0
      %1172 = vmatpush1.bf16.msra.mxu0 %v1153
      %1173 = vmatprep.subr.bf16.mxu0 0
      %1174 = vmatpush1.bf16.msra.mxu0 %v1154
      %1175 = vmatprep.subr.bf16.mxu0 0
      %1176 = vmatpush1.bf16.msra.mxu0 %v1155
      %1177 = vmatprep.subr.bf16.mxu0 0
      %1178 = vmatpush1.bf16.msra.mxu0 %v1156
      %1179 = vmatprep.subr.bf16.mxu0 0
      %1180 = vmatpush1.bf16.msra.mxu0 %v1157
      %1181 = vmatprep.subr.bf16.mxu0 0
      %1182 = vmatpush1.bf16.msra.mxu0 %v1158
      %1183 = vmatprep.subr.bf16.mxu0 0
      %1184 = vmatpush1.bf16.msra.mxu0 0
      %1185 = vmatprep.subr.bf16.mxu0 0
      %1186 = vmatpush1.bf16.msra.mxu0 0
      %1187 = vmatprep.subr.bf16.mxu0 0
      %1188 = vmatpush1.bf16.msra.mxu0 0
      %1189 = vmatprep.subr.bf16.mxu0 0
      %1190 = vmatpush1.bf16.msra.mxu0 0
      %1191 = vmatprep.subr.bf16.mxu0 0
      %1192 = vmatpush1.bf16.msra.mxu0 0
      %1193 = vmatprep.subr.bf16.mxu0 0
      %1194 = vmatpush1.bf16.msra.mxu0 0
      %1195 = vmatprep.subr.bf16.mxu0 0
      %1196 = vmatpush1.bf16.msra.mxu0 0
      %1197 = vmatprep.subr.bf16.mxu0 0
      %1198 = vmatpush1.bf16.msra.mxu0 0
      %1199 = vmatprep.mubr.bf16.mxu0 0
      %1200 = vmatmul.mubr.bf16.gmra.mrb[0].mxu0 %v1095
      %v1201 = vpop.f32.mrb[0].mxu0
      %v1202 = vadd.f32 %v1117, %v1201
      %v1203 = vpop.f32.mrb[0].mxu0
      %v1204 = vpop.f32.mrb[0].mxu0
      %v1205 = vadd.f32 %v1117, %v1204
      %v1206 = vpop.f32.mrb[0].mxu0
      %1207 = vdwg.mxu0
      %v1208 = vadd.f32 %v962, %v1202
      %v1209 = vadd.f32 %v963, %v1205
      %v1210 = vld [vmem:[%s280 + $0x8] sm:$0x1]
      %v1211 = vld [vmem:[%s280 + $0x9] sm:$0x1]
      %1212 = vadd.xlane.f32.xlu0 %v1208
      %v1213 = vpop.xlane.xlu0 %1212
      %1214 = vadd.xlane.f32.xlu0 %v1209
      %v1215 = vpop.xlane.xlu0 %1214
      %v1216 = vmul.f32 %v1213, 0.03125
      %v1217 = vmul.f32 %v1215, 0.03125
      %v1218 = vsub.f32 %v1208, %v1216
      %v1219 = vsub.f32 %v1209, %v1217
      %v1220 = vmul.f32 %v1218, %v295
      %v1221 = vmul.f32 %v1219, %v295
      %v1222 = vmul.f32 %v1220, %v1220
      %v1223 = vmul.f32 %v1221, %v1221
      %1224 = vadd.xlane.f32.xlu0 %v1222
      %v1225 = vpop.xlane.xlu0 %1224
      %1226 = vadd.xlane.f32.xlu0 %v1223
      %v1227 = vpop.xlane.xlu0 %1226
      %v1228 = vmul.f32 %v1225, 0.03125
      %v1229 = vmul.f32 %v1227, 0.03125
      %v1230 = vadd.f32 %v1228, 1e-12
      %v1231 = vadd.f32 %v1229, 1e-12
      %v1232 = vrsqrt.pop %v1230
      %v1233 = vrsqrt.pop %v1231
      %v1234 = vmul.f32 %v1220, %v1232
      %v1235 = vmul.f32 %v1221, %v1233
      %v1237 = vlaneseq
      %v1238 = vshrl.u32 %v1237, 7
      %v1239 = vsub.s32 0, %v1238
      %v1240 = vrot.slane %v1210, %v1239
      %v1242 = vmul.f32 %v1234, %v1240
      %v1243 = vmul.f32 %v1235, %v1240
      %v1245 = vlaneseq
      %v1246 = vshrl.u32 %v1245, 7
      %v1247 = vsub.s32 0, %v1246
      %v1248 = vrot.slane %v1211, %v1247
      %v1250 = vadd.f32 %v1242, %v1248
      %v1251 = vadd.f32 %v1243, %v1248
      %1252 = vst [vmem:[%s285] sm:$0xff] %v1250
      %1253 = vst [vmem:[%s285 + $0x8] sm:$0xff] %v1251
      %v1254 = vpack.c.bf16 %v1250, %v1250
      %v1255 = vpack.c.bf16 %v1251, %v1251
      %v1256 = vld [vmem:[%s276 + $0x18] sm:$0xf]
      %v1257 = vld [vmem:[%s276 + $0x34] sm:$0xf]
      %v1258 = vld [vmem:[%s276 + $0x50] sm:$0xf]
      %v1259 = vld [vmem:[%s276 + $0x6c] sm:$0xf]
      %v1260 = vld [vmem:[%s276 + $0x88] sm:$0xf]
      %v1261 = vld [vmem:[%s276 + $0xa4] sm:$0xf]
      %v1262 = vld [vmem:[%s276 + $0xc0] sm:$0xf]
      %v1263 = vld [vmem:[%s276 + $0xdc] sm:$0xf]
      %v1264 = vld [vmem:[%s276 + $0xf8] sm:$0xf]
      %v1265 = vld [vmem:[%s276 + $0x114] sm:$0xf]
      %v1266 = vld [vmem:[%s276 + $0x130] sm:$0xf]
      %v1267 = vld [vmem:[%s276 + $0x14c] sm:$0xf]
      %v1268 = vld [vmem:[%s276 + $0x168] sm:$0xf]
      %v1269 = vld [vmem:[%s276 + $0x184] sm:$0xf]
      %v1270 = vld [vmem:[%s276 + $0x1a0] sm:$0xf]
      %v1271 = vld [vmem:[%s276 + $0x1bc] sm:$0xf]
      %v1272 = vld [vmem:[%s280 + $0xa] sm:$0x1]
      %v1274 = vlaneseq
      %v1275 = vshrl.u32 %v1274, 7
      %v1276 = vsub.s32 0, %v1275
      %v1277 = vrot.slane %v1272, %v1276
      %v1281 = vunpack.c.l.b16 %v1254
      %v1282 = vunpack.c.l.b16 %v1255
      %v1283 = vrot.slane %v1282, 7
      %vm1284 = vcmask 1041409
      %v1285 = vsel %vm1284, %v1283, %v1281
      %v1286 = vpack.c.b16 %v1285, %v1285
      %v1304 = vunpack.c.l.b16 %v1256
      %v1305 = vunpack.c.l.b16 %v1257
      %v1306 = vunpack.c.l.b16 %v1258
      %v1307 = vunpack.c.l.b16 %v1259
      %v1308 = vunpack.c.l.b16 %v1260
      %v1309 = vunpack.c.l.b16 %v1261
      %v1310 = vunpack.c.l.b16 %v1262
      %v1311 = vunpack.c.l.b16 %v1263
      %v1312 = vunpack.c.l.b16 %v1264
      %v1313 = vunpack.c.l.b16 %v1265
      %v1314 = vunpack.c.l.b16 %v1266
      %v1315 = vunpack.c.l.b16 %v1267
      %v1316 = vunpack.c.l.b16 %v1268
      %v1317 = vunpack.c.l.b16 %v1269
      %v1318 = vunpack.c.l.b16 %v1270
      %v1319 = vunpack.c.l.b16 %v1271
      %v1320 = vpack.c.b16 %v1305, %v1304
      %v1321 = vpack.c.b16 %v1307, %v1306
      %v1322 = vpack.c.b16 %v1309, %v1308
      %v1323 = vpack.c.b16 %v1311, %v1310
      %v1324 = vpack.c.b16 %v1313, %v1312
      %v1325 = vpack.c.b16 %v1315, %v1314
      %v1326 = vpack.c.b16 %v1317, %v1316
      %v1327 = vpack.c.b16 %v1319, %v1318
      %1336 = vmatprep.subr.bf16.mxu0 0
      %1337 = vmatpush1.bf16.msra.mxu0 %v1320
      %1338 = vmatprep.subr.bf16.mxu0 0
      %1339 = vmatpush1.bf16.msra.mxu0 %v1321
      %1340 = vmatprep.subr.bf16.mxu0 0
      %1341 = vmatpush1.bf16.msra.mxu0 %v1322
      %1342 = vmatprep.subr.bf16.mxu0 0
      %1343 = vmatpush1.bf16.msra.mxu0 %v1323
      %1344 = vmatprep.subr.bf16.mxu0 0
      %1345 = vmatpush1.bf16.msra.mxu0 %v1324
      %1346 = vmatprep.subr.bf16.mxu0 0
      %1347 = vmatpush1.bf16.msra.mxu0 %v1325
      %1348 = vmatprep.subr.bf16.mxu0 0
      %1349 = vmatpush1.bf16.msra.mxu0 %v1326
      %1350 = vmatprep.subr.bf16.mxu0 0
      %1351 = vmatpush1.bf16.msra.mxu0 %v1327
      %1352 = vmatprep.subr.bf16.mxu0 0
      %1353 = vmatpush1.bf16.msra.mxu0 0
      %1354 = vmatprep.subr.bf16.mxu0 0
      %1355 = vmatpush1.bf16.msra.mxu0 0
      %1356 = vmatprep.subr.bf16.mxu0 0
      %1357 = vmatpush1.bf16.msra.mxu0 0
      %1358 = vmatprep.subr.bf16.mxu0 0
      %1359 = vmatpush1.bf16.msra.mxu0 0
      %1360 = vmatprep.subr.bf16.mxu0 0
      %1361 = vmatpush1.bf16.msra.mxu0 0
      %1362 = vmatprep.subr.bf16.mxu0 0
      %1363 = vmatpush1.bf16.msra.mxu0 0
      %1364 = vmatprep.subr.bf16.mxu0 0
      %1365 = vmatpush1.bf16.msra.mxu0 0
      %1366 = vmatprep.subr.bf16.mxu0 0
      %1367 = vmatpush1.bf16.msra.mxu0 0
      %1368 = vmatprep.mubr.bf16.mxu0 0
      %1369 = vmatmul.mubr.bf16.gmra.mrb[0].mxu0 %v1286
      %v1370 = vpop.f32.mrb[0].mxu0
      %v1371 = vadd.f32 %v1277, %v1370
      %v1372 = vpop.f32.mrb[0].mxu0
      %v1373 = vpop.f32.mrb[0].mxu0
      %v1374 = vpop.f32.mrb[0].mxu0
      %1375 = vdwg.mxu0
      %v1376 = vtanh.pop %v1371
      %1377 = vst [vmem:[%s289] sm:$0x3] %v1376
      %p1378 = scmp.lt.s32.totalorder %s17, 1
      %s1379 = scalar_select %p1378, %s17, 1
      %s1380 = smul.addr %s1379, 2
      %s1381 = smul.addr %s1380, 8
      %s1382 = scalar_lea.vmem %s4, %s1381
      %p1383 = scmp.lt.s32.totalorder %s17, 1
      %s1384 = scalar_select %p1383, %s17, 1
      %s1385 = smul.addr %s1384, 2
      %s1386 = scalar_lea.vmem %s5, %s1385
      // Predicated region
      $region37: #{mixblink_forward.1} parent=35 // pred_check
        %p1387 = pneg %p139
      $region38: #{mixblink_forward.1} parent=35 // pred_check_branch
        %1389 = sbr.rel (%p1387) target = $region40
      $region39: #{mixblink_forward.1} parent=35 // pred_region
        _
      $region40: #{mixblink_forward.1} parent=35 // pred_fallthru
        _
      // Predicated region
      $region41: #{mixblink_forward.1} parent=35 // pred_check
        %p1390 = pneg %p165
      $region42: #{mixblink_forward.1} parent=35 // pred_check_branch
        %1392 = sbr.rel (%p1390) target = $region44
      $region43: #{mixblink_forward.1} parent=35 // pred_region
        _
      $region44: #{mixblink_forward.1} parent=35 // pred_fallthru
        _
    $region36: #{mixblink_forward.1} parent=5 // pred_fallthru
      _
    %p1393 = scmp.le.s32.totalorder 2, %s12
    // Predicated region
    $region45: #{mixblink_forward.1} parent=5 // pred_check
      %p1394 = pneg %p1393
    $region46: #{mixblink_forward.1} parent=5 // pred_check_branch
      %1396 = sbr.rel (%p1394) target = $region48
    $region47: #{mixblink_forward.1} parent=5 // pred_region
      %s1397 = ssub.s32 %s12, 2
      // Predicated region
      $region49: #{mixblink_forward.1} parent=47 // pred_check
        %p1398 = pneg %p145
      $region50: #{mixblink_forward.1} parent=47 // pred_check_branch
        %1400 = sbr.rel (%p1398) target = $region52
      $region51: #{mixblink_forward.1} parent=47 // pred_region
        %p1401 = scmp.lt.s32.totalorder %s18, 1
        %s1402 = scalar_select %p1401, %s18, 1
        %s1403 = smul.addr %s1402, 2
        %s1404 = smul.addr %s1403, 8
        %s1405 = scalar_lea.vmem %s4, %s1404
      $region52: #{mixblink_forward.1} parent=47 // pred_fallthru
        _
      // Predicated region
      $region53: #{mixblink_forward.1} parent=47 // pred_check
        %p1406 = pneg %p171
      $region54: #{mixblink_forward.1} parent=47 // pred_check_branch
        %1408 = sbr.rel (%p1406) target = $region56
      $region55: #{mixblink_forward.1} parent=47 // pred_region
        %p1409 = scmp.lt.s32.totalorder %s18, 1
        %s1410 = scalar_select %p1409, %s18, 1
        %s1411 = smul.addr %s1410, 2
        %s1412 = scalar_lea.vmem %s5, %s1411
      $region56: #{mixblink_forward.1} parent=47 // pred_fallthru
        _
    $region48: #{mixblink_forward.1} parent=5 // pred_fallthru
      _
  $region6: #{mixblink_forward.1} parent=0 // loop_footer
    %s16 = sadd.s32 1, %s12
  $region7: #{mixblink_forward.1} parent=0 // loop_footer_branch
    %11 = sbr.rel target = $region3
  $region8: #{mixblink_forward.1} parent=0 // loop_exit
    _

</llo_original>
